<compile_context>
chip_gen: v7x
topology: tpu7x:2x2x1
jax: 0.10.0
libtpu: 0.0.40
codegen_flags: <defaults>
</compile_context>

<pallas_src>
import functools

import jax
import jax.numpy as jnp
from jax.experimental import pallas as pl
from jax.experimental.pallas import tpu as pltpu


def _conv_block_kernel(x_ref, w_ref, b_ref, o_ref, xpad_ref, *,
                       c_in, c_out, K, pad, L, L_out, pool):
    # x_ref:    (TILE_N, C_in, L)           input tile, NCL, L on the lane axis
    # w_ref:    (C_out*C_in*K,)   SMEM      conv weights, PyTorch (C_out, C_in, K) order
    # b_ref:    (C_out,)          SMEM      bias
    # o_ref:    (TILE_N, C_out, L_out//pool) ReLU + max-pooled output
    # xpad_ref: (TILE_N, C_in, L + 2*pad)   VMEM scratch: zero-padded input (halo)
    L_pool = L_out // pool

    # In-kernel halo: zero the scratch and drop the tile into its interior.
    if pad > 0:
        xpad_ref[...] = jnp.zeros_like(xpad_ref)
        xpad_ref[:, :, pad:pad + L] = x_ref[...].astype(jnp.float32)
    else:
        xpad_ref[...] = x_ref[...].astype(jnp.float32)

    # Register-resident "im2col": the K*C_in shifted rows, loaded once, reused by
    # every output channel.
    taps = []
    for ci in range(c_in):
        for k in range(K):
            taps.append(xpad_ref[:, ci, k:k + L_out])        # (TILE_N, L_out)

    # One-hot lane-compaction matrix for the max-pool: column j selects lane j*pool.
    if pool > 1:
        L_valid = L_out - pool + 1
        rows = jax.lax.broadcasted_iota(jnp.int32, (L_valid, L_pool), 0)
        cols = jax.lax.broadcasted_iota(jnp.int32, (L_valid, L_pool), 1)
        select = (rows == cols * pool).astype(jnp.float32)

    for co in range(c_out):
        # Conv1d for channel co: K*C_in scalar-broadcast FMAs on the VPU,
        # accumulator initialized from the first tap.
        acc = None
        for ci in range(c_in):
            for k in range(K):
                w = w_ref[(co * c_in + ci) * K + k]           # scalar from SMEM
                term = w * taps[ci * K + k]
                acc = term if acc is None else acc + term
        acc = jnp.maximum(acc + b_ref[co], 0.0)               # bias + ReLU

        if pool == 1:
            o_ref[:, co, :] = acc.astype(o_ref.dtype)
        else:
            # MaxPool1d(pool): running max over the pool window ...
            m = acc[:, 0:L_valid]
            for p in range(1, pool):
                m = jnp.maximum(m, acc[:, p:p + L_valid])
            # ... then compact every pool-th lane with an exact one-hot matmul.
            pooled = jnp.dot(m, select, preferred_element_type=jnp.float32)
            o_ref[:, co, :] = pooled.astype(o_ref.dtype)

    # TODO(synk): nn.Dropout(0.1) is identity in eval mode; training-mode dropout
    # would need pltpu.prng_seed / prng_random_bits and is intentionally omitted.


def conv_block(x, weight, bias, *, ksize, pool_size=None):
    """ConvBlock forward.  x: (N, C_in, L); weight: (C_out, C_in, K); bias: (C_out,).

    Returns (N, C_out, L_out // pool) in PyTorch's NCL layout (no transposes needed).
    """
    N, c_in, L = x.shape
    c_out = weight.shape[0]
    K = ksize
    pad = K // 2
    L_out = L + 2 * pad - K + 1            # Conv1d(padding=K//2), stride 1
    pool = pool_size if pool_size else 1
    L_pool = L_out // pool

    # Batch tile: amortize per-grid-step overhead, but keep >= 2 grid steps when
    # possible so v7x's two TensorCores both get work.  block_n always divides N.
    if N > 1:
        upper = max(1, min(8, N // 2))
        block_n = max(d for d in range(1, upper + 1) if N % d == 0)
    else:
        block_n = 1
    grid_n = N // block_n

    w_flat = weight.astype(jnp.float32).reshape(-1)          # (C_out*C_in*K,) -> SMEM
    b_flat = bias.astype(jnp.float32)                        # (C_out,)        -> SMEM

    kernel = functools.partial(_conv_block_kernel, c_in=c_in, c_out=c_out,
                               K=K, pad=pad, L=L, L_out=L_out, pool=pool)

    return pl.pallas_call(
        kernel,
        out_shape=jax.ShapeDtypeStruct((N, c_out, L_pool), x.dtype),
        grid=(grid_n,),
        in_specs=[
            pl.BlockSpec((block_n, c_in, L), lambda n: (n, 0, 0)),
            pl.BlockSpec(memory_space=pltpu.MemorySpace.SMEM),
            pl.BlockSpec(memory_space=pltpu.MemorySpace.SMEM),
        ],
        out_specs=pl.BlockSpec((block_n, c_out, L_pool), lambda n: (n, 0, 0)),
        scratch_shapes=[pltpu.VMEM((block_n, c_in, L + 2 * pad), jnp.float32)],
        compiler_params=pltpu.CompilerParams(dimension_semantics=("parallel",)),
    )(x, w_flat, b_flat)


def _reference(x, weight, bias, *, ksize, pool_size=None):
    """Pure-JAX reference matching PyTorch Conv1d + ReLU + MaxPool1d."""
    pad = ksize // 2
    y = jax.lax.conv_general_dilated(
        x, weight, window_strides=(1,), padding=[(pad, pad)],
        dimension_numbers=("NCH", "OIH", "NCH"),
        precision=jax.lax.Precision.HIGHEST)
    y = y + bias.reshape(1, -1, 1)
    y = jnp.maximum(y, 0.0)
    if pool_size:
        N, C, Lo = y.shape
        Lp = Lo // pool_size
        y = y[:, :, :Lp * pool_size].reshape(N, C, Lp, pool_size).max(axis=-1)
    return y


if __name__ == "__main__":
    # Shapes consistent with ConvBlock(in_ch=4, out_ch=8, ksize=3, pool_size=2)
    N, IN_CH, OUT_CH, L, KSIZE, POOL = 2, 4, 8, 16, 3, 2

    key = jax.random.PRNGKey(0)
    kx, kw, kb = jax.random.split(key, 3)

    x = jax.random.normal(kx, (N, IN_CH, L), dtype=jnp.float32)

    # PyTorch-style Conv1d init: U(-bound, bound), bound = 1/sqrt(C_in * K)
    bound = 1.0 / (IN_CH * KSIZE) ** 0.5
    weight = jax.random.uniform(kw, (OUT_CH, IN_CH, KSIZE), jnp.float32, -bound, bound)
    bias = jax.random.uniform(kb, (OUT_CH,), jnp.float32, -bound, bound)

    # ConvBlock(4, 8, 3, pool_size=2)
    out = jax.block_until_ready(conv_block(x, weight, bias, ksize=KSIZE, pool_size=POOL))
    ref = _reference(x, weight, bias, ksize=KSIZE, pool_size=POOL)
    assert out.shape == (N, OUT_CH, L // POOL), out.shape
    assert jnp.allclose(out, ref, atol=1e-5, rtol=1e-5), "pooled ConvBlock mismatch"

    # ConvBlock(4, 8, 3) without pooling (pool_size=None path).
    out2 = jax.block_until_ready(conv_block(x, weight, bias, ksize=KSIZE, pool_size=None))
    ref2 = _reference(x, weight, bias, ksize=KSIZE, pool_size=None)
    assert out2.shape == (N, OUT_CH, L), out2.shape
    assert jnp.allclose(out2, ref2, atol=1e-5, rtol=1e-5), "ConvBlock mismatch"

    print("KERNEL_OK")
</pallas_src>

<mosaic_0001>
module attributes {stable_mosaic.version = 11 : i64} {
  func.func @_conv_block_kernel(%arg0: i32, %arg1: memref<1x4x16xf32, #tpu.memory_space<vmem>>, %arg2: memref<96xf32, #tpu.memory_space<smem>>, %arg3: memref<8xf32, #tpu.memory_space<smem>>, %arg4: memref<1x8x8xf32, #tpu.memory_space<vmem>>, %arg5: memref<1x4x18xf32, #tpu.memory_space<vmem>>) attributes {dimension_semantics = [#tpu.dimension_semantics<parallel>], iteration_bounds = array<i64: 2>, scalar_prefetch = 0 : i64, scratch_operands = 1 : i64, tpu.core_type = #tpu.core_type<tc>, window_params = [{transform_indices = @transform_0, window_bounds = array<i64: 1, 4, 16>}, {transform_indices = @transform_1, window_bounds = array<i64: 96>}, {transform_indices = @transform_2, window_bounds = array<i64: 8>}, {transform_indices = @transform_3, window_bounds = array<i64: 1, 8, 8>}]} {
    %cst = arith.constant 0.000000e+00 : f32
    %0 = vector.broadcast %cst : f32 to vector<1x4x18xf32>
    %c0 = arith.constant 0 : index
    %c0_0 = arith.constant 0 : index
    %c0_1 = arith.constant 0 : index
    %1 = vector.load %arg5[%c0, %c0_0, %c0_1] : memref<1x4x18xf32, #tpu.memory_space<vmem>>, vector<1x4x18xf32>
    tpu.vector_store %arg5[%c0, %c0_0, %c0_1], %0 {strides = array<i32>} : memref<1x4x18xf32, #tpu.memory_space<vmem>>, vector<1x4x18xf32>,
    %c0_2 = arith.constant 0 : index
    %c0_3 = arith.constant 0 : index
    %c0_4 = arith.constant 0 : index
    %2 = vector.load %arg1[%c0_2, %c0_3, %c0_4] : memref<1x4x16xf32, #tpu.memory_space<vmem>>, vector<1x4x16xf32>
    %c0_5 = arith.constant 0 : index
    %c0_6 = arith.constant 0 : index
    %c1 = arith.constant 1 : index
    %3 = vector.load %arg5[%c0_5, %c0_6, %c1] : memref<1x4x18xf32, #tpu.memory_space<vmem>>, vector<1x4x16xf32>
    tpu.vector_store %arg5[%c0_5, %c0_6, %c1], %2 {strides = array<i32>} : memref<1x4x18xf32, #tpu.memory_space<vmem>>, vector<1x4x16xf32>,
    %c0_7 = arith.constant 0 : index
    %c0_8 = arith.constant 0 : index
    %c0_9 = arith.constant 0 : index
    %4 = vector.load %arg5[%c0_7, %c0_8, %c0_9] : memref<1x4x18xf32, #tpu.memory_space<vmem>>, vector<1x1x16xf32>
    %5 = vector.shape_cast %4 : vector<1x1x16xf32> to vector<1x16xf32>
    %c0_10 = arith.constant 0 : index
    %c0_11 = arith.constant 0 : index
    %c1_12 = arith.constant 1 : index
    %6 = vector.load %arg5[%c0_10, %c0_11, %c1_12] : memref<1x4x18xf32, #tpu.memory_space<vmem>>, vector<1x1x16xf32>
    %7 = vector.shape_cast %6 : vector<1x1x16xf32> to vector<1x16xf32>
    %c0_13 = arith.constant 0 : index
    %c0_14 = arith.constant 0 : index
    %c2 = arith.constant 2 : index
    %8 = vector.load %arg5[%c0_13, %c0_14, %c2] : memref<1x4x18xf32, #tpu.memory_space<vmem>>, vector<1x1x16xf32>
    %9 = vector.shape_cast %8 : vector<1x1x16xf32> to vector<1x16xf32>
    %c0_15 = arith.constant 0 : index
    %c1_16 = arith.constant 1 : index
    %c0_17 = arith.constant 0 : index
    %10 = vector.load %arg5[%c0_15, %c1_16, %c0_17] : memref<1x4x18xf32, #tpu.memory_space<vmem>>, vector<1x1x16xf32>
    %11 = vector.shape_cast %10 : vector<1x1x16xf32> to vector<1x16xf32>
    %c0_18 = arith.constant 0 : index
    %c1_19 = arith.constant 1 : index
    %c1_20 = arith.constant 1 : index
    %12 = vector.load %arg5[%c0_18, %c1_19, %c1_20] : memref<1x4x18xf32, #tpu.memory_space<vmem>>, vector<1x1x16xf32>
    %13 = vector.shape_cast %12 : vector<1x1x16xf32> to vector<1x16xf32>
    %c0_21 = arith.constant 0 : index
    %c1_22 = arith.constant 1 : index
    %c2_23 = arith.constant 2 : index
    %14 = vector.load %arg5[%c0_21, %c1_22, %c2_23] : memref<1x4x18xf32, #tpu.memory_space<vmem>>, vector<1x1x16xf32>
    %15 = vector.shape_cast %14 : vector<1x1x16xf32> to vector<1x16xf32>
    %c0_24 = arith.constant 0 : index
    %c2_25 = arith.constant 2 : index
    %c0_26 = arith.constant 0 : index
    %16 = vector.load %arg5[%c0_24, %c2_25, %c0_26] : memref<1x4x18xf32, #tpu.memory_space<vmem>>, vector<1x1x16xf32>
    %17 = vector.shape_cast %16 : vector<1x1x16xf32> to vector<1x16xf32>
    %c0_27 = arith.constant 0 : index
    %c2_28 = arith.constant 2 : index
    %c1_29 = arith.constant 1 : index
    %18 = vector.load %arg5[%c0_27, %c2_28, %c1_29] : memref<1x4x18xf32, #tpu.memory_space<vmem>>, vector<1x1x16xf32>
    %19 = vector.shape_cast %18 : vector<1x1x16xf32> to vector<1x16xf32>
    %c0_30 = arith.constant 0 : index
    %c2_31 = arith.constant 2 : index
    %c2_32 = arith.constant 2 : index
    %20 = vector.load %arg5[%c0_30, %c2_31, %c2_32] : memref<1x4x18xf32, #tpu.memory_space<vmem>>, vector<1x1x16xf32>
    %21 = vector.shape_cast %20 : vector<1x1x16xf32> to vector<1x16xf32>
    %c0_33 = arith.constant 0 : index
    %c3 = arith.constant 3 : index
    %c0_34 = arith.constant 0 : index
    %22 = vector.load %arg5[%c0_33, %c3, %c0_34] : memref<1x4x18xf32, #tpu.memory_space<vmem>>, vector<1x1x16xf32>
    %23 = vector.shape_cast %22 : vector<1x1x16xf32> to vector<1x16xf32>
    %c0_35 = arith.constant 0 : index
    %c3_36 = arith.constant 3 : index
    %c1_37 = arith.constant 1 : index
    %24 = vector.load %arg5[%c0_35, %c3_36, %c1_37] : memref<1x4x18xf32, #tpu.memory_space<vmem>>, vector<1x1x16xf32>
    %25 = vector.shape_cast %24 : vector<1x1x16xf32> to vector<1x16xf32>
    %c0_38 = arith.constant 0 : index
    %c3_39 = arith.constant 3 : index
    %c2_40 = arith.constant 2 : index
    %26 = vector.load %arg5[%c0_38, %c3_39, %c2_40] : memref<1x4x18xf32, #tpu.memory_space<vmem>>, vector<1x1x16xf32>
    %27 = vector.shape_cast %26 : vector<1x1x16xf32> to vector<1x16xf32>
    %28 = tpu.iota {dimensions = array<i32: 0>} : vector<15x8xi32>
    %29 = tpu.iota {dimensions = array<i32: 1>} : vector<15x8xi32>
    %c2_i32 = arith.constant 2 : i32
    %30 = vector.broadcast %c2_i32 : i32 to vector<15x8xi32>
    %31 = arith.muli %29, %30 : vector<15x8xi32>
    %32 = arith.cmpi eq, %28, %31 : vector<15x8xi32>
    %33 = arith.extui %32 : vector<15x8xi1> to vector<15x8xi32>
    %34 = arith.sitofp %33 : vector<15x8xi32> to vector<15x8xf32>
    %c0_41 = arith.constant 0 : index
    %35 = memref.load %arg2[%c0_41] : memref<96xf32, #tpu.memory_space<smem>>
    %36 = vector.broadcast %35 : f32 to vector<1x16xf32>
    %37 = arith.mulf %36, %5 : vector<1x16xf32>
    %c1_42 = arith.constant 1 : index
    %38 = memref.load %arg2[%c1_42] : memref<96xf32, #tpu.memory_space<smem>>
    %39 = vector.broadcast %38 : f32 to vector<1x16xf32>
    %40 = arith.mulf %39, %7 : vector<1x16xf32>
    %41 = arith.addf %37, %40 : vector<1x16xf32>
    %c2_43 = arith.constant 2 : index
    %42 = memref.load %arg2[%c2_43] : memref<96xf32, #tpu.memory_space<smem>>
    %43 = vector.broadcast %42 : f32 to vector<1x16xf32>
    %44 = arith.mulf %43, %9 : vector<1x16xf32>
    %45 = arith.addf %41, %44 : vector<1x16xf32>
    %c3_44 = arith.constant 3 : index
    %46 = memref.load %arg2[%c3_44] : memref<96xf32, #tpu.memory_space<smem>>
    %47 = vector.broadcast %46 : f32 to vector<1x16xf32>
    %48 = arith.mulf %47, %11 : vector<1x16xf32>
    %49 = arith.addf %45, %48 : vector<1x16xf32>
    %c4 = arith.constant 4 : index
    %50 = memref.load %arg2[%c4] : memref<96xf32, #tpu.memory_space<smem>>
    %51 = vector.broadcast %50 : f32 to vector<1x16xf32>
    %52 = arith.mulf %51, %13 : vector<1x16xf32>
    %53 = arith.addf %49, %52 : vector<1x16xf32>
    %c5 = arith.constant 5 : index
    %54 = memref.load %arg2[%c5] : memref<96xf32, #tpu.memory_space<smem>>
    %55 = vector.broadcast %54 : f32 to vector<1x16xf32>
    %56 = arith.mulf %55, %15 : vector<1x16xf32>
    %57 = arith.addf %53, %56 : vector<1x16xf32>
    %c6 = arith.constant 6 : index
    %58 = memref.load %arg2[%c6] : memref<96xf32, #tpu.memory_space<smem>>
    %59 = vector.broadcast %58 : f32 to vector<1x16xf32>
    %60 = arith.mulf %59, %17 : vector<1x16xf32>
    %61 = arith.addf %57, %60 : vector<1x16xf32>
    %c7 = arith.constant 7 : index
    %62 = memref.load %arg2[%c7] : memref<96xf32, #tpu.memory_space<smem>>
    %63 = vector.broadcast %62 : f32 to vector<1x16xf32>
    %64 = arith.mulf %63, %19 : vector<1x16xf32>
    %65 = arith.addf %61, %64 : vector<1x16xf32>
    %c8 = arith.constant 8 : index
    %66 = memref.load %arg2[%c8] : memref<96xf32, #tpu.memory_space<smem>>
    %67 = vector.broadcast %66 : f32 to vector<1x16xf32>
    %68 = arith.mulf %67, %21 : vector<1x16xf32>
    %69 = arith.addf %65, %68 : vector<1x16xf32>
    %c9 = arith.constant 9 : index
    %70 = memref.load %arg2[%c9] : memref<96xf32, #tpu.memory_space<smem>>
    %71 = vector.broadcast %70 : f32 to vector<1x16xf32>
    %72 = arith.mulf %71, %23 : vector<1x16xf32>
    %73 = arith.addf %69, %72 : vector<1x16xf32>
    %c10 = arith.constant 10 : index
    %74 = memref.load %arg2[%c10] : memref<96xf32, #tpu.memory_space<smem>>
    %75 = vector.broadcast %74 : f32 to vector<1x16xf32>
    %76 = arith.mulf %75, %25 : vector<1x16xf32>
    %77 = arith.addf %73, %76 : vector<1x16xf32>
    %c11 = arith.constant 11 : index
    %78 = memref.load %arg2[%c11] : memref<96xf32, #tpu.memory_space<smem>>
    %79 = vector.broadcast %78 : f32 to vector<1x16xf32>
    %80 = arith.mulf %79, %27 : vector<1x16xf32>
    %81 = arith.addf %77, %80 : vector<1x16xf32>
    %c0_45 = arith.constant 0 : index
    %82 = memref.load %arg3[%c0_45] : memref<8xf32, #tpu.memory_space<smem>>
    %83 = vector.broadcast %82 : f32 to vector<1x16xf32>
    %84 = arith.addf %81, %83 : vector<1x16xf32>
    %cst_46 = arith.constant 0.000000e+00 : f32
    %85 = vector.broadcast %cst_46 : f32 to vector<1x16xf32>
    %86 = arith.maximumf %84, %85 : vector<1x16xf32>
    %87 = vector.extract_strided_slice %86 {offsets = [0, 0], sizes = [1, 15], strides = [1, 1]} : vector<1x16xf32> to vector<1x15xf32>
    %88 = vector.extract_strided_slice %86 {offsets = [0, 1], sizes = [1, 15], strides = [1, 1]} : vector<1x16xf32> to vector<1x15xf32>
    %89 = arith.maximumf %87, %88 : vector<1x15xf32>
    %cst_47 = arith.constant dense<0.000000e+00> : vector<1x8xf32>
    %90 = tpu.matmul %89, %34, %cst_47 {dimension_numbers = #tpu.dot_dimension_numbers<[1], [0], [0], [1], [0, 0, 1, 1], [], []>} : vector<1x15xf32>, vector<15x8xf32>, vector<1x8xf32> -> vector<1x8xf32>
    %c0_48 = arith.constant 0 : index
    %c0_49 = arith.constant 0 : index
    %c0_50 = arith.constant 0 : index
    %91 = vector.load %arg4[%c0_48, %c0_49, %c0_50] : memref<1x8x8xf32, #tpu.memory_space<vmem>>, vector<1x1x8xf32>
    %92 = vector.shape_cast %91 : vector<1x1x8xf32> to vector<1x8xf32>
    %93 = vector.shape_cast %90 : vector<1x8xf32> to vector<1x1x8xf32>
    tpu.vector_store %arg4[%c0_48, %c0_49, %c0_50], %93 {strides = array<i32>} : memref<1x8x8xf32, #tpu.memory_space<vmem>>, vector<1x1x8xf32>,
    %c12 = arith.constant 12 : index
    %94 = memref.load %arg2[%c12] : memref<96xf32, #tpu.memory_space<smem>>
    %95 = vector.broadcast %94 : f32 to vector<1x16xf32>
    %96 = arith.mulf %95, %5 : vector<1x16xf32>
    %c13 = arith.constant 13 : index
    %97 = memref.load %arg2[%c13] : memref<96xf32, #tpu.memory_space<smem>>
    %98 = vector.broadcast %97 : f32 to vector<1x16xf32>
    %99 = arith.mulf %98, %7 : vector<1x16xf32>
    %100 = arith.addf %96, %99 : vector<1x16xf32>
    %c14 = arith.constant 14 : index
    %101 = memref.load %arg2[%c14] : memref<96xf32, #tpu.memory_space<smem>>
    %102 = vector.broadcast %101 : f32 to vector<1x16xf32>
    %103 = arith.mulf %102, %9 : vector<1x16xf32>
    %104 = arith.addf %100, %103 : vector<1x16xf32>
    %c15 = arith.constant 15 : index
    %105 = memref.load %arg2[%c15] : memref<96xf32, #tpu.memory_space<smem>>
    %106 = vector.broadcast %105 : f32 to vector<1x16xf32>
    %107 = arith.mulf %106, %11 : vector<1x16xf32>
    %108 = arith.addf %104, %107 : vector<1x16xf32>
    %c16 = arith.constant 16 : index
    %109 = memref.load %arg2[%c16] : memref<96xf32, #tpu.memory_space<smem>>
    %110 = vector.broadcast %109 : f32 to vector<1x16xf32>
    %111 = arith.mulf %110, %13 : vector<1x16xf32>
    %112 = arith.addf %108, %111 : vector<1x16xf32>
    %c17 = arith.constant 17 : index
    %113 = memref.load %arg2[%c17] : memref<96xf32, #tpu.memory_space<smem>>
    %114 = vector.broadcast %113 : f32 to vector<1x16xf32>
    %115 = arith.mulf %114, %15 : vector<1x16xf32>
    %116 = arith.addf %112, %115 : vector<1x16xf32>
    %c18 = arith.constant 18 : index
    %117 = memref.load %arg2[%c18] : memref<96xf32, #tpu.memory_space<smem>>
    %118 = vector.broadcast %117 : f32 to vector<1x16xf32>
    %119 = arith.mulf %118, %17 : vector<1x16xf32>
    %120 = arith.addf %116, %119 : vector<1x16xf32>
    %c19 = arith.constant 19 : index
    %121 = memref.load %arg2[%c19] : memref<96xf32, #tpu.memory_space<smem>>
    %122 = vector.broadcast %121 : f32 to vector<1x16xf32>
    %123 = arith.mulf %122, %19 : vector<1x16xf32>
    %124 = arith.addf %120, %123 : vector<1x16xf32>
    %c20 = arith.constant 20 : index
    %125 = memref.load %arg2[%c20] : memref<96xf32, #tpu.memory_space<smem>>
    %126 = vector.broadcast %125 : f32 to vector<1x16xf32>
    %127 = arith.mulf %126, %21 : vector<1x16xf32>
    %128 = arith.addf %124, %127 : vector<1x16xf32>
    %c21 = arith.constant 21 : index
    %129 = memref.load %arg2[%c21] : memref<96xf32, #tpu.memory_space<smem>>
    %130 = vector.broadcast %129 : f32 to vector<1x16xf32>
    %131 = arith.mulf %130, %23 : vector<1x16xf32>
    %132 = arith.addf %128, %131 : vector<1x16xf32>
    %c22 = arith.constant 22 : index
    %133 = memref.load %arg2[%c22] : memref<96xf32, #tpu.memory_space<smem>>
    %134 = vector.broadcast %133 : f32 to vector<1x16xf32>
    %135 = arith.mulf %134, %25 : vector<1x16xf32>
    %136 = arith.addf %132, %135 : vector<1x16xf32>
    %c23 = arith.constant 23 : index
    %137 = memref.load %arg2[%c23] : memref<96xf32, #tpu.memory_space<smem>>
    %138 = vector.broadcast %137 : f32 to vector<1x16xf32>
    %139 = arith.mulf %138, %27 : vector<1x16xf32>
    %140 = arith.addf %136, %139 : vector<1x16xf32>
    %c1_51 = arith.constant 1 : index
    %141 = memref.load %arg3[%c1_51] : memref<8xf32, #tpu.memory_space<smem>>
    %142 = vector.broadcast %141 : f32 to vector<1x16xf32>
    %143 = arith.addf %140, %142 : vector<1x16xf32>
    %cst_52 = arith.constant 0.000000e+00 : f32
    %144 = vector.broadcast %cst_52 : f32 to vector<1x16xf32>
    %145 = arith.maximumf %143, %144 : vector<1x16xf32>
    %146 = vector.extract_strided_slice %145 {offsets = [0, 0], sizes = [1, 15], strides = [1, 1]} : vector<1x16xf32> to vector<1x15xf32>
    %147 = vector.extract_strided_slice %145 {offsets = [0, 1], sizes = [1, 15], strides = [1, 1]} : vector<1x16xf32> to vector<1x15xf32>
    %148 = arith.maximumf %146, %147 : vector<1x15xf32>
    %cst_53 = arith.constant dense<0.000000e+00> : vector<1x8xf32>
    %149 = tpu.matmul %148, %34, %cst_53 {dimension_numbers = #tpu.dot_dimension_numbers<[1], [0], [0], [1], [0, 0, 1, 1], [], []>} : vector<1x15xf32>, vector<15x8xf32>, vector<1x8xf32> -> vector<1x8xf32>
    %c0_54 = arith.constant 0 : index
    %c1_55 = arith.constant 1 : index
    %c0_56 = arith.constant 0 : index
    %150 = vector.load %arg4[%c0_54, %c1_55, %c0_56] : memref<1x8x8xf32, #tpu.memory_space<vmem>>, vector<1x1x8xf32>
    %151 = vector.shape_cast %150 : vector<1x1x8xf32> to vector<1x8xf32>
    %152 = vector.shape_cast %149 : vector<1x8xf32> to vector<1x1x8xf32>
    tpu.vector_store %arg4[%c0_54, %c1_55, %c0_56], %152 {strides = array<i32>} : memref<1x8x8xf32, #tpu.memory_space<vmem>>, vector<1x1x8xf32>,
    %c24 = arith.constant 24 : index
    %153 = memref.load %arg2[%c24] : memref<96xf32, #tpu.memory_space<smem>>
    %154 = vector.broadcast %153 : f32 to vector<1x16xf32>
    %155 = arith.mulf %154, %5 : vector<1x16xf32>
    %c25 = arith.constant 25 : index
    %156 = memref.load %arg2[%c25] : memref<96xf32, #tpu.memory_space<smem>>
    %157 = vector.broadcast %156 : f32 to vector<1x16xf32>
    %158 = arith.mulf %157, %7 : vector<1x16xf32>
    %159 = arith.addf %155, %158 : vector<1x16xf32>
    %c26 = arith.constant 26 : index
    %160 = memref.load %arg2[%c26] : memref<96xf32, #tpu.memory_space<smem>>
    %161 = vector.broadcast %160 : f32 to vector<1x16xf32>
    %162 = arith.mulf %161, %9 : vector<1x16xf32>
    %163 = arith.addf %159, %162 : vector<1x16xf32>
    %c27 = arith.constant 27 : index
    %164 = memref.load %arg2[%c27] : memref<96xf32, #tpu.memory_space<smem>>
    %165 = vector.broadcast %164 : f32 to vector<1x16xf32>
    %166 = arith.mulf %165, %11 : vector<1x16xf32>
    %167 = arith.addf %163, %166 : vector<1x16xf32>
    %c28 = arith.constant 28 : index
    %168 = memref.load %arg2[%c28] : memref<96xf32, #tpu.memory_space<smem>>
    %169 = vector.broadcast %168 : f32 to vector<1x16xf32>
    %170 = arith.mulf %169, %13 : vector<1x16xf32>
    %171 = arith.addf %167, %170 : vector<1x16xf32>
    %c29 = arith.constant 29 : index
    %172 = memref.load %arg2[%c29] : memref<96xf32, #tpu.memory_space<smem>>
    %173 = vector.broadcast %172 : f32 to vector<1x16xf32>
    %174 = arith.mulf %173, %15 : vector<1x16xf32>
    %175 = arith.addf %171, %174 : vector<1x16xf32>
    %c30 = arith.constant 30 : index
    %176 = memref.load %arg2[%c30] : memref<96xf32, #tpu.memory_space<smem>>
    %177 = vector.broadcast %176 : f32 to vector<1x16xf32>
    %178 = arith.mulf %177, %17 : vector<1x16xf32>
    %179 = arith.addf %175, %178 : vector<1x16xf32>
    %c31 = arith.constant 31 : index
    %180 = memref.load %arg2[%c31] : memref<96xf32, #tpu.memory_space<smem>>
    %181 = vector.broadcast %180 : f32 to vector<1x16xf32>
    %182 = arith.mulf %181, %19 : vector<1x16xf32>
    %183 = arith.addf %179, %182 : vector<1x16xf32>
    %c32 = arith.constant 32 : index
    %184 = memref.load %arg2[%c32] : memref<96xf32, #tpu.memory_space<smem>>
    %185 = vector.broadcast %184 : f32 to vector<1x16xf32>
    %186 = arith.mulf %185, %21 : vector<1x16xf32>
    %187 = arith.addf %183, %186 : vector<1x16xf32>
    %c33 = arith.constant 33 : index
    %188 = memref.load %arg2[%c33] : memref<96xf32, #tpu.memory_space<smem>>
    %189 = vector.broadcast %188 : f32 to vector<1x16xf32>
    %190 = arith.mulf %189, %23 : vector<1x16xf32>
    %191 = arith.addf %187, %190 : vector<1x16xf32>
    %c34 = arith.constant 34 : index
    %192 = memref.load %arg2[%c34] : memref<96xf32, #tpu.memory_space<smem>>
    %193 = vector.broadcast %192 : f32 to vector<1x16xf32>
    %194 = arith.mulf %193, %25 : vector<1x16xf32>
    %195 = arith.addf %191, %194 : vector<1x16xf32>
    %c35 = arith.constant 35 : index
    %196 = memref.load %arg2[%c35] : memref<96xf32, #tpu.memory_space<smem>>
    %197 = vector.broadcast %196 : f32 to vector<1x16xf32>
    %198 = arith.mulf %197, %27 : vector<1x16xf32>
    %199 = arith.addf %195, %198 : vector<1x16xf32>
    %c2_57 = arith.constant 2 : index
    %200 = memref.load %arg3[%c2_57] : memref<8xf32, #tpu.memory_space<smem>>
    %201 = vector.broadcast %200 : f32 to vector<1x16xf32>
    %202 = arith.addf %199, %201 : vector<1x16xf32>
    %cst_58 = arith.constant 0.000000e+00 : f32
    %203 = vector.broadcast %cst_58 : f32 to vector<1x16xf32>
    %204 = arith.maximumf %202, %203 : vector<1x16xf32>
    %205 = vector.extract_strided_slice %204 {offsets = [0, 0], sizes = [1, 15], strides = [1, 1]} : vector<1x16xf32> to vector<1x15xf32>
    %206 = vector.extract_strided_slice %204 {offsets = [0, 1], sizes = [1, 15], strides = [1, 1]} : vector<1x16xf32> to vector<1x15xf32>
    %207 = arith.maximumf %205, %206 : vector<1x15xf32>
    %cst_59 = arith.constant dense<0.000000e+00> : vector<1x8xf32>
    %208 = tpu.matmul %207, %34, %cst_59 {dimension_numbers = #tpu.dot_dimension_numbers<[1], [0], [0], [1], [0, 0, 1, 1], [], []>} : vector<1x15xf32>, vector<15x8xf32>, vector<1x8xf32> -> vector<1x8xf32>
    %c0_60 = arith.constant 0 : index
    %c2_61 = arith.constant 2 : index
    %c0_62 = arith.constant 0 : index
    %209 = vector.load %arg4[%c0_60, %c2_61, %c0_62] : memref<1x8x8xf32, #tpu.memory_space<vmem>>, vector<1x1x8xf32>
    %210 = vector.shape_cast %209 : vector<1x1x8xf32> to vector<1x8xf32>
    %211 = vector.shape_cast %208 : vector<1x8xf32> to vector<1x1x8xf32>
    tpu.vector_store %arg4[%c0_60, %c2_61, %c0_62], %211 {strides = array<i32>} : memref<1x8x8xf32, #tpu.memory_space<vmem>>, vector<1x1x8xf32>,
    %c36 = arith.constant 36 : index
    %212 = memref.load %arg2[%c36] : memref<96xf32, #tpu.memory_space<smem>>
    %213 = vector.broadcast %212 : f32 to vector<1x16xf32>
    %214 = arith.mulf %213, %5 : vector<1x16xf32>
    %c37 = arith.constant 37 : index
    %215 = memref.load %arg2[%c37] : memref<96xf32, #tpu.memory_space<smem>>
    %216 = vector.broadcast %215 : f32 to vector<1x16xf32>
    %217 = arith.mulf %216, %7 : vector<1x16xf32>
    %218 = arith.addf %214, %217 : vector<1x16xf32>
    %c38 = arith.constant 38 : index
    %219 = memref.load %arg2[%c38] : memref<96xf32, #tpu.memory_space<smem>>
    %220 = vector.broadcast %219 : f32 to vector<1x16xf32>
    %221 = arith.mulf %220, %9 : vector<1x16xf32>
    %222 = arith.addf %218, %221 : vector<1x16xf32>
    %c39 = arith.constant 39 : index
    %223 = memref.load %arg2[%c39] : memref<96xf32, #tpu.memory_space<smem>>
    %224 = vector.broadcast %223 : f32 to vector<1x16xf32>
    %225 = arith.mulf %224, %11 : vector<1x16xf32>
    %226 = arith.addf %222, %225 : vector<1x16xf32>
    %c40 = arith.constant 40 : index
    %227 = memref.load %arg2[%c40] : memref<96xf32, #tpu.memory_space<smem>>
    %228 = vector.broadcast %227 : f32 to vector<1x16xf32>
    %229 = arith.mulf %228, %13 : vector<1x16xf32>
    %230 = arith.addf %226, %229 : vector<1x16xf32>
    %c41 = arith.constant 41 : index
    %231 = memref.load %arg2[%c41] : memref<96xf32, #tpu.memory_space<smem>>
    %232 = vector.broadcast %231 : f32 to vector<1x16xf32>
    %233 = arith.mulf %232, %15 : vector<1x16xf32>
    %234 = arith.addf %230, %233 : vector<1x16xf32>
    %c42 = arith.constant 42 : index
    %235 = memref.load %arg2[%c42] : memref<96xf32, #tpu.memory_space<smem>>
    %236 = vector.broadcast %235 : f32 to vector<1x16xf32>
    %237 = arith.mulf %236, %17 : vector<1x16xf32>
    %238 = arith.addf %234, %237 : vector<1x16xf32>
    %c43 = arith.constant 43 : index
    %239 = memref.load %arg2[%c43] : memref<96xf32, #tpu.memory_space<smem>>
    %240 = vector.broadcast %239 : f32 to vector<1x16xf32>
    %241 = arith.mulf %240, %19 : vector<1x16xf32>
    %242 = arith.addf %238, %241 : vector<1x16xf32>
    %c44 = arith.constant 44 : index
    %243 = memref.load %arg2[%c44] : memref<96xf32, #tpu.memory_space<smem>>
    %244 = vector.broadcast %243 : f32 to vector<1x16xf32>
    %245 = arith.mulf %244, %21 : vector<1x16xf32>
    %246 = arith.addf %242, %245 : vector<1x16xf32>
    %c45 = arith.constant 45 : index
    %247 = memref.load %arg2[%c45] : memref<96xf32, #tpu.memory_space<smem>>
    %248 = vector.broadcast %247 : f32 to vector<1x16xf32>
    %249 = arith.mulf %248, %23 : vector<1x16xf32>
    %250 = arith.addf %246, %249 : vector<1x16xf32>
    %c46 = arith.constant 46 : index
    %251 = memref.load %arg2[%c46] : memref<96xf32, #tpu.memory_space<smem>>
    %252 = vector.broadcast %251 : f32 to vector<1x16xf32>
    %253 = arith.mulf %252, %25 : vector<1x16xf32>
    %254 = arith.addf %250, %253 : vector<1x16xf32>
    %c47 = arith.constant 47 : index
    %255 = memref.load %arg2[%c47] : memref<96xf32, #tpu.memory_space<smem>>
    %256 = vector.broadcast %255 : f32 to vector<1x16xf32>
    %257 = arith.mulf %256, %27 : vector<1x16xf32>
    %258 = arith.addf %254, %257 : vector<1x16xf32>
    %c3_63 = arith.constant 3 : index
    %259 = memref.load %arg3[%c3_63] : memref<8xf32, #tpu.memory_space<smem>>
    %260 = vector.broadcast %259 : f32 to vector<1x16xf32>
    %261 = arith.addf %258, %260 : vector<1x16xf32>
    %cst_64 = arith.constant 0.000000e+00 : f32
    %262 = vector.broadcast %cst_64 : f32 to vector<1x16xf32>
    %263 = arith.maximumf %261, %262 : vector<1x16xf32>
    %264 = vector.extract_strided_slice %263 {offsets = [0, 0], sizes = [1, 15], strides = [1, 1]} : vector<1x16xf32> to vector<1x15xf32>
    %265 = vector.extract_strided_slice %263 {offsets = [0, 1], sizes = [1, 15], strides = [1, 1]} : vector<1x16xf32> to vector<1x15xf32>
    %266 = arith.maximumf %264, %265 : vector<1x15xf32>
    %cst_65 = arith.constant dense<0.000000e+00> : vector<1x8xf32>
    %267 = tpu.matmul %266, %34, %cst_65 {dimension_numbers = #tpu.dot_dimension_numbers<[1], [0], [0], [1], [0, 0, 1, 1], [], []>} : vector<1x15xf32>, vector<15x8xf32>, vector<1x8xf32> -> vector<1x8xf32>
    %c0_66 = arith.constant 0 : index
    %c3_67 = arith.constant 3 : index
    %c0_68 = arith.constant 0 : index
    %268 = vector.load %arg4[%c0_66, %c3_67, %c0_68] : memref<1x8x8xf32, #tpu.memory_space<vmem>>, vector<1x1x8xf32>
    %269 = vector.shape_cast %268 : vector<1x1x8xf32> to vector<1x8xf32>
    %270 = vector.shape_cast %267 : vector<1x8xf32> to vector<1x1x8xf32>
    tpu.vector_store %arg4[%c0_66, %c3_67, %c0_68], %270 {strides = array<i32>} : memref<1x8x8xf32, #tpu.memory_space<vmem>>, vector<1x1x8xf32>,
    %c48 = arith.constant 48 : index
    %271 = memref.load %arg2[%c48] : memref<96xf32, #tpu.memory_space<smem>>
    %272 = vector.broadcast %271 : f32 to vector<1x16xf32>
    %273 = arith.mulf %272, %5 : vector<1x16xf32>
    %c49 = arith.constant 49 : index
    %274 = memref.load %arg2[%c49] : memref<96xf32, #tpu.memory_space<smem>>
    %275 = vector.broadcast %274 : f32 to vector<1x16xf32>
    %276 = arith.mulf %275, %7 : vector<1x16xf32>
    %277 = arith.addf %273, %276 : vector<1x16xf32>
    %c50 = arith.constant 50 : index
    %278 = memref.load %arg2[%c50] : memref<96xf32, #tpu.memory_space<smem>>
    %279 = vector.broadcast %278 : f32 to vector<1x16xf32>
    %280 = arith.mulf %279, %9 : vector<1x16xf32>
    %281 = arith.addf %277, %280 : vector<1x16xf32>
    %c51 = arith.constant 51 : index
    %282 = memref.load %arg2[%c51] : memref<96xf32, #tpu.memory_space<smem>>
    %283 = vector.broadcast %282 : f32 to vector<1x16xf32>
    %284 = arith.mulf %283, %11 : vector<1x16xf32>
    %285 = arith.addf %281, %284 : vector<1x16xf32>
    %c52 = arith.constant 52 : index
    %286 = memref.load %arg2[%c52] : memref<96xf32, #tpu.memory_space<smem>>
    %287 = vector.broadcast %286 : f32 to vector<1x16xf32>
    %288 = arith.mulf %287, %13 : vector<1x16xf32>
    %289 = arith.addf %285, %288 : vector<1x16xf32>
    %c53 = arith.constant 53 : index
    %290 = memref.load %arg2[%c53] : memref<96xf32, #tpu.memory_space<smem>>
    %291 = vector.broadcast %290 : f32 to vector<1x16xf32>
    %292 = arith.mulf %291, %15 : vector<1x16xf32>
    %293 = arith.addf %289, %292 : vector<1x16xf32>
    %c54 = arith.constant 54 : index
    %294 = memref.load %arg2[%c54] : memref<96xf32, #tpu.memory_space<smem>>
    %295 = vector.broadcast %294 : f32 to vector<1x16xf32>
    %296 = arith.mulf %295, %17 : vector<1x16xf32>
    %297 = arith.addf %293, %296 : vector<1x16xf32>
    %c55 = arith.constant 55 : index
    %298 = memref.load %arg2[%c55] : memref<96xf32, #tpu.memory_space<smem>>
    %299 = vector.broadcast %298 : f32 to vector<1x16xf32>
    %300 = arith.mulf %299, %19 : vector<1x16xf32>
    %301 = arith.addf %297, %300 : vector<1x16xf32>
    %c56 = arith.constant 56 : index
    %302 = memref.load %arg2[%c56] : memref<96xf32, #tpu.memory_space<smem>>
    %303 = vector.broadcast %302 : f32 to vector<1x16xf32>
    %304 = arith.mulf %303, %21 : vector<1x16xf32>
    %305 = arith.addf %301, %304 : vector<1x16xf32>
    %c57 = arith.constant 57 : index
    %306 = memref.load %arg2[%c57] : memref<96xf32, #tpu.memory_space<smem>>
    %307 = vector.broadcast %306 : f32 to vector<1x16xf32>
    %308 = arith.mulf %307, %23 : vector<1x16xf32>
    %309 = arith.addf %305, %308 : vector<1x16xf32>
    %c58 = arith.constant 58 : index
    %310 = memref.load %arg2[%c58] : memref<96xf32, #tpu.memory_space<smem>>
    %311 = vector.broadcast %310 : f32 to vector<1x16xf32>
    %312 = arith.mulf %311, %25 : vector<1x16xf32>
    %313 = arith.addf %309, %312 : vector<1x16xf32>
    %c59 = arith.constant 59 : index
    %314 = memref.load %arg2[%c59] : memref<96xf32, #tpu.memory_space<smem>>
    %315 = vector.broadcast %314 : f32 to vector<1x16xf32>
    %316 = arith.mulf %315, %27 : vector<1x16xf32>
    %317 = arith.addf %313, %316 : vector<1x16xf32>
    %c4_69 = arith.constant 4 : index
    %318 = memref.load %arg3[%c4_69] : memref<8xf32, #tpu.memory_space<smem>>
    %319 = vector.broadcast %318 : f32 to vector<1x16xf32>
    %320 = arith.addf %317, %319 : vector<1x16xf32>
    %cst_70 = arith.constant 0.000000e+00 : f32
    %321 = vector.broadcast %cst_70 : f32 to vector<1x16xf32>
    %322 = arith.maximumf %320, %321 : vector<1x16xf32>
    %323 = vector.extract_strided_slice %322 {offsets = [0, 0], sizes = [1, 15], strides = [1, 1]} : vector<1x16xf32> to vector<1x15xf32>
    %324 = vector.extract_strided_slice %322 {offsets = [0, 1], sizes = [1, 15], strides = [1, 1]} : vector<1x16xf32> to vector<1x15xf32>
    %325 = arith.maximumf %323, %324 : vector<1x15xf32>
    %cst_71 = arith.constant dense<0.000000e+00> : vector<1x8xf32>
    %326 = tpu.matmul %325, %34, %cst_71 {dimension_numbers = #tpu.dot_dimension_numbers<[1], [0], [0], [1], [0, 0, 1, 1], [], []>} : vector<1x15xf32>, vector<15x8xf32>, vector<1x8xf32> -> vector<1x8xf32>
    %c0_72 = arith.constant 0 : index
    %c4_73 = arith.constant 4 : index
    %c0_74 = arith.constant 0 : index
    %327 = vector.load %arg4[%c0_72, %c4_73, %c0_74] : memref<1x8x8xf32, #tpu.memory_space<vmem>>, vector<1x1x8xf32>
    %328 = vector.shape_cast %327 : vector<1x1x8xf32> to vector<1x8xf32>
    %329 = vector.shape_cast %326 : vector<1x8xf32> to vector<1x1x8xf32>
    tpu.vector_store %arg4[%c0_72, %c4_73, %c0_74], %329 {strides = array<i32>} : memref<1x8x8xf32, #tpu.memory_space<vmem>>, vector<1x1x8xf32>,
    %c60 = arith.constant 60 : index
    %330 = memref.load %arg2[%c60] : memref<96xf32, #tpu.memory_space<smem>>
    %331 = vector.broadcast %330 : f32 to vector<1x16xf32>
    %332 = arith.mulf %331, %5 : vector<1x16xf32>
    %c61 = arith.constant 61 : index
    %333 = memref.load %arg2[%c61] : memref<96xf32, #tpu.memory_space<smem>>
    %334 = vector.broadcast %333 : f32 to vector<1x16xf32>
    %335 = arith.mulf %334, %7 : vector<1x16xf32>
    %336 = arith.addf %332, %335 : vector<1x16xf32>
    %c62 = arith.constant 62 : index
    %337 = memref.load %arg2[%c62] : memref<96xf32, #tpu.memory_space<smem>>
    %338 = vector.broadcast %337 : f32 to vector<1x16xf32>
    %339 = arith.mulf %338, %9 : vector<1x16xf32>
    %340 = arith.addf %336, %339 : vector<1x16xf32>
    %c63 = arith.constant 63 : index
    %341 = memref.load %arg2[%c63] : memref<96xf32, #tpu.memory_space<smem>>
    %342 = vector.broadcast %341 : f32 to vector<1x16xf32>
    %343 = arith.mulf %342, %11 : vector<1x16xf32>
    %344 = arith.addf %340, %343 : vector<1x16xf32>
    %c64 = arith.constant 64 : index
    %345 = memref.load %arg2[%c64] : memref<96xf32, #tpu.memory_space<smem>>
    %346 = vector.broadcast %345 : f32 to vector<1x16xf32>
    %347 = arith.mulf %346, %13 : vector<1x16xf32>
    %348 = arith.addf %344, %347 : vector<1x16xf32>
    %c65 = arith.constant 65 : index
    %349 = memref.load %arg2[%c65] : memref<96xf32, #tpu.memory_space<smem>>
    %350 = vector.broadcast %349 : f32 to vector<1x16xf32>
    %351 = arith.mulf %350, %15 : vector<1x16xf32>
    %352 = arith.addf %348, %351 : vector<1x16xf32>
    %c66 = arith.constant 66 : index
    %353 = memref.load %arg2[%c66] : memref<96xf32, #tpu.memory_space<smem>>
    %354 = vector.broadcast %353 : f32 to vector<1x16xf32>
    %355 = arith.mulf %354, %17 : vector<1x16xf32>
    %356 = arith.addf %352, %355 : vector<1x16xf32>
    %c67 = arith.constant 67 : index
    %357 = memref.load %arg2[%c67] : memref<96xf32, #tpu.memory_space<smem>>
    %358 = vector.broadcast %357 : f32 to vector<1x16xf32>
    %359 = arith.mulf %358, %19 : vector<1x16xf32>
    %360 = arith.addf %356, %359 : vector<1x16xf32>
    %c68 = arith.constant 68 : index
    %361 = memref.load %arg2[%c68] : memref<96xf32, #tpu.memory_space<smem>>
    %362 = vector.broadcast %361 : f32 to vector<1x16xf32>
    %363 = arith.mulf %362, %21 : vector<1x16xf32>
    %364 = arith.addf %360, %363 : vector<1x16xf32>
    %c69 = arith.constant 69 : index
    %365 = memref.load %arg2[%c69] : memref<96xf32, #tpu.memory_space<smem>>
    %366 = vector.broadcast %365 : f32 to vector<1x16xf32>
    %367 = arith.mulf %366, %23 : vector<1x16xf32>
    %368 = arith.addf %364, %367 : vector<1x16xf32>
    %c70 = arith.constant 70 : index
    %369 = memref.load %arg2[%c70] : memref<96xf32, #tpu.memory_space<smem>>
    %370 = vector.broadcast %369 : f32 to vector<1x16xf32>
    %371 = arith.mulf %370, %25 : vector<1x16xf32>
    %372 = arith.addf %368, %371 : vector<1x16xf32>
    %c71 = arith.constant 71 : index
    %373 = memref.load %arg2[%c71] : memref<96xf32, #tpu.memory_space<smem>>
    %374 = vector.broadcast %373 : f32 to vector<1x16xf32>
    %375 = arith.mulf %374, %27 : vector<1x16xf32>
    %376 = arith.addf %372, %375 : vector<1x16xf32>
    %c5_75 = arith.constant 5 : index
    %377 = memref.load %arg3[%c5_75] : memref<8xf32, #tpu.memory_space<smem>>
    %378 = vector.broadcast %377 : f32 to vector<1x16xf32>
    %379 = arith.addf %376, %378 : vector<1x16xf32>
    %cst_76 = arith.constant 0.000000e+00 : f32
    %380 = vector.broadcast %cst_76 : f32 to vector<1x16xf32>
    %381 = arith.maximumf %379, %380 : vector<1x16xf32>
    %382 = vector.extract_strided_slice %381 {offsets = [0, 0], sizes = [1, 15], strides = [1, 1]} : vector<1x16xf32> to vector<1x15xf32>
    %383 = vector.extract_strided_slice %381 {offsets = [0, 1], sizes = [1, 15], strides = [1, 1]} : vector<1x16xf32> to vector<1x15xf32>
    %384 = arith.maximumf %382, %383 : vector<1x15xf32>
    %cst_77 = arith.constant dense<0.000000e+00> : vector<1x8xf32>
    %385 = tpu.matmul %384, %34, %cst_77 {dimension_numbers = #tpu.dot_dimension_numbers<[1], [0], [0], [1], [0, 0, 1, 1], [], []>} : vector<1x15xf32>, vector<15x8xf32>, vector<1x8xf32> -> vector<1x8xf32>
    %c0_78 = arith.constant 0 : index
    %c5_79 = arith.constant 5 : index
    %c0_80 = arith.constant 0 : index
    %386 = vector.load %arg4[%c0_78, %c5_79, %c0_80] : memref<1x8x8xf32, #tpu.memory_space<vmem>>, vector<1x1x8xf32>
    %387 = vector.shape_cast %386 : vector<1x1x8xf32> to vector<1x8xf32>
    %388 = vector.shape_cast %385 : vector<1x8xf32> to vector<1x1x8xf32>
    tpu.vector_store %arg4[%c0_78, %c5_79, %c0_80], %388 {strides = array<i32>} : memref<1x8x8xf32, #tpu.memory_space<vmem>>, vector<1x1x8xf32>,
    %c72 = arith.constant 72 : index
    %389 = memref.load %arg2[%c72] : memref<96xf32, #tpu.memory_space<smem>>
    %390 = vector.broadcast %389 : f32 to vector<1x16xf32>
    %391 = arith.mulf %390, %5 : vector<1x16xf32>
    %c73 = arith.constant 73 : index
    %392 = memref.load %arg2[%c73] : memref<96xf32, #tpu.memory_space<smem>>
    %393 = vector.broadcast %392 : f32 to vector<1x16xf32>
    %394 = arith.mulf %393, %7 : vector<1x16xf32>
    %395 = arith.addf %391, %394 : vector<1x16xf32>
    %c74 = arith.constant 74 : index
    %396 = memref.load %arg2[%c74] : memref<96xf32, #tpu.memory_space<smem>>
    %397 = vector.broadcast %396 : f32 to vector<1x16xf32>
    %398 = arith.mulf %397, %9 : vector<1x16xf32>
    %399 = arith.addf %395, %398 : vector<1x16xf32>
    %c75 = arith.constant 75 : index
    %400 = memref.load %arg2[%c75] : memref<96xf32, #tpu.memory_space<smem>>
    %401 = vector.broadcast %400 : f32 to vector<1x16xf32>
    %402 = arith.mulf %401, %11 : vector<1x16xf32>
    %403 = arith.addf %399, %402 : vector<1x16xf32>
    %c76 = arith.constant 76 : index
    %404 = memref.load %arg2[%c76] : memref<96xf32, #tpu.memory_space<smem>>
    %405 = vector.broadcast %404 : f32 to vector<1x16xf32>
    %406 = arith.mulf %405, %13 : vector<1x16xf32>
    %407 = arith.addf %403, %406 : vector<1x16xf32>
    %c77 = arith.constant 77 : index
    %408 = memref.load %arg2[%c77] : memref<96xf32, #tpu.memory_space<smem>>
    %409 = vector.broadcast %408 : f32 to vector<1x16xf32>
    %410 = arith.mulf %409, %15 : vector<1x16xf32>
    %411 = arith.addf %407, %410 : vector<1x16xf32>
    %c78 = arith.constant 78 : index
    %412 = memref.load %arg2[%c78] : memref<96xf32, #tpu.memory_space<smem>>
    %413 = vector.broadcast %412 : f32 to vector<1x16xf32>
    %414 = arith.mulf %413, %17 : vector<1x16xf32>
    %415 = arith.addf %411, %414 : vector<1x16xf32>
    %c79 = arith.constant 79 : index
    %416 = memref.load %arg2[%c79] : memref<96xf32, #tpu.memory_space<smem>>
    %417 = vector.broadcast %416 : f32 to vector<1x16xf32>
    %418 = arith.mulf %417, %19 : vector<1x16xf32>
    %419 = arith.addf %415, %418 : vector<1x16xf32>
    %c80 = arith.constant 80 : index
    %420 = memref.load %arg2[%c80] : memref<96xf32, #tpu.memory_space<smem>>
    %421 = vector.broadcast %420 : f32 to vector<1x16xf32>
    %422 = arith.mulf %421, %21 : vector<1x16xf32>
    %423 = arith.addf %419, %422 : vector<1x16xf32>
    %c81 = arith.constant 81 : index
    %424 = memref.load %arg2[%c81] : memref<96xf32, #tpu.memory_space<smem>>
    %425 = vector.broadcast %424 : f32 to vector<1x16xf32>
    %426 = arith.mulf %425, %23 : vector<1x16xf32>
    %427 = arith.addf %423, %426 : vector<1x16xf32>
    %c82 = arith.constant 82 : index
    %428 = memref.load %arg2[%c82] : memref<96xf32, #tpu.memory_space<smem>>
    %429 = vector.broadcast %428 : f32 to vector<1x16xf32>
    %430 = arith.mulf %429, %25 : vector<1x16xf32>
    %431 = arith.addf %427, %430 : vector<1x16xf32>
    %c83 = arith.constant 83 : index
    %432 = memref.load %arg2[%c83] : memref<96xf32, #tpu.memory_space<smem>>
    %433 = vector.broadcast %432 : f32 to vector<1x16xf32>
    %434 = arith.mulf %433, %27 : vector<1x16xf32>
    %435 = arith.addf %431, %434 : vector<1x16xf32>
    %c6_81 = arith.constant 6 : index
    %436 = memref.load %arg3[%c6_81] : memref<8xf32, #tpu.memory_space<smem>>
    %437 = vector.broadcast %436 : f32 to vector<1x16xf32>
    %438 = arith.addf %435, %437 : vector<1x16xf32>
    %cst_82 = arith.constant 0.000000e+00 : f32
    %439 = vector.broadcast %cst_82 : f32 to vector<1x16xf32>
    %440 = arith.maximumf %438, %439 : vector<1x16xf32>
    %441 = vector.extract_strided_slice %440 {offsets = [0, 0], sizes = [1, 15], strides = [1, 1]} : vector<1x16xf32> to vector<1x15xf32>
    %442 = vector.extract_strided_slice %440 {offsets = [0, 1], sizes = [1, 15], strides = [1, 1]} : vector<1x16xf32> to vector<1x15xf32>
    %443 = arith.maximumf %441, %442 : vector<1x15xf32>
    %cst_83 = arith.constant dense<0.000000e+00> : vector<1x8xf32>
    %444 = tpu.matmul %443, %34, %cst_83 {dimension_numbers = #tpu.dot_dimension_numbers<[1], [0], [0], [1], [0, 0, 1, 1], [], []>} : vector<1x15xf32>, vector<15x8xf32>, vector<1x8xf32> -> vector<1x8xf32>
    %c0_84 = arith.constant 0 : index
    %c6_85 = arith.constant 6 : index
    %c0_86 = arith.constant 0 : index
    %445 = vector.load %arg4[%c0_84, %c6_85, %c0_86] : memref<1x8x8xf32, #tpu.memory_space<vmem>>, vector<1x1x8xf32>
    %446 = vector.shape_cast %445 : vector<1x1x8xf32> to vector<1x8xf32>
    %447 = vector.shape_cast %444 : vector<1x8xf32> to vector<1x1x8xf32>
    tpu.vector_store %arg4[%c0_84, %c6_85, %c0_86], %447 {strides = array<i32>} : memref<1x8x8xf32, #tpu.memory_space<vmem>>, vector<1x1x8xf32>,
    %c84 = arith.constant 84 : index
    %448 = memref.load %arg2[%c84] : memref<96xf32, #tpu.memory_space<smem>>
    %449 = vector.broadcast %448 : f32 to vector<1x16xf32>
    %450 = arith.mulf %449, %5 : vector<1x16xf32>
    %c85 = arith.constant 85 : index
    %451 = memref.load %arg2[%c85] : memref<96xf32, #tpu.memory_space<smem>>
    %452 = vector.broadcast %451 : f32 to vector<1x16xf32>
    %453 = arith.mulf %452, %7 : vector<1x16xf32>
    %454 = arith.addf %450, %453 : vector<1x16xf32>
    %c86 = arith.constant 86 : index
    %455 = memref.load %arg2[%c86] : memref<96xf32, #tpu.memory_space<smem>>
    %456 = vector.broadcast %455 : f32 to vector<1x16xf32>
    %457 = arith.mulf %456, %9 : vector<1x16xf32>
    %458 = arith.addf %454, %457 : vector<1x16xf32>
    %c87 = arith.constant 87 : index
    %459 = memref.load %arg2[%c87] : memref<96xf32, #tpu.memory_space<smem>>
    %460 = vector.broadcast %459 : f32 to vector<1x16xf32>
    %461 = arith.mulf %460, %11 : vector<1x16xf32>
    %462 = arith.addf %458, %461 : vector<1x16xf32>
    %c88 = arith.constant 88 : index
    %463 = memref.load %arg2[%c88] : memref<96xf32, #tpu.memory_space<smem>>
    %464 = vector.broadcast %463 : f32 to vector<1x16xf32>
    %465 = arith.mulf %464, %13 : vector<1x16xf32>
    %466 = arith.addf %462, %465 : vector<1x16xf32>
    %c89 = arith.constant 89 : index
    %467 = memref.load %arg2[%c89] : memref<96xf32, #tpu.memory_space<smem>>
    %468 = vector.broadcast %467 : f32 to vector<1x16xf32>
    %469 = arith.mulf %468, %15 : vector<1x16xf32>
    %470 = arith.addf %466, %469 : vector<1x16xf32>
    %c90 = arith.constant 90 : index
    %471 = memref.load %arg2[%c90] : memref<96xf32, #tpu.memory_space<smem>>
    %472 = vector.broadcast %471 : f32 to vector<1x16xf32>
    %473 = arith.mulf %472, %17 : vector<1x16xf32>
    %474 = arith.addf %470, %473 : vector<1x16xf32>
    %c91 = arith.constant 91 : index
    %475 = memref.load %arg2[%c91] : memref<96xf32, #tpu.memory_space<smem>>
    %476 = vector.broadcast %475 : f32 to vector<1x16xf32>
    %477 = arith.mulf %476, %19 : vector<1x16xf32>
    %478 = arith.addf %474, %477 : vector<1x16xf32>
    %c92 = arith.constant 92 : index
    %479 = memref.load %arg2[%c92] : memref<96xf32, #tpu.memory_space<smem>>
    %480 = vector.broadcast %479 : f32 to vector<1x16xf32>
    %481 = arith.mulf %480, %21 : vector<1x16xf32>
    %482 = arith.addf %478, %481 : vector<1x16xf32>
    %c93 = arith.constant 93 : index
    %483 = memref.load %arg2[%c93] : memref<96xf32, #tpu.memory_space<smem>>
    %484 = vector.broadcast %483 : f32 to vector<1x16xf32>
    %485 = arith.mulf %484, %23 : vector<1x16xf32>
    %486 = arith.addf %482, %485 : vector<1x16xf32>
    %c94 = arith.constant 94 : index
    %487 = memref.load %arg2[%c94] : memref<96xf32, #tpu.memory_space<smem>>
    %488 = vector.broadcast %487 : f32 to vector<1x16xf32>
    %489 = arith.mulf %488, %25 : vector<1x16xf32>
    %490 = arith.addf %486, %489 : vector<1x16xf32>
    %c95 = arith.constant 95 : index
    %491 = memref.load %arg2[%c95] : memref<96xf32, #tpu.memory_space<smem>>
    %492 = vector.broadcast %491 : f32 to vector<1x16xf32>
    %493 = arith.mulf %492, %27 : vector<1x16xf32>
    %494 = arith.addf %490, %493 : vector<1x16xf32>
    %c7_87 = arith.constant 7 : index
    %495 = memref.load %arg3[%c7_87] : memref<8xf32, #tpu.memory_space<smem>>
    %496 = vector.broadcast %495 : f32 to vector<1x16xf32>
    %497 = arith.addf %494, %496 : vector<1x16xf32>
    %cst_88 = arith.constant 0.000000e+00 : f32
    %498 = vector.broadcast %cst_88 : f32 to vector<1x16xf32>
    %499 = arith.maximumf %497, %498 : vector<1x16xf32>
    %500 = vector.extract_strided_slice %499 {offsets = [0, 0], sizes = [1, 15], strides = [1, 1]} : vector<1x16xf32> to vector<1x15xf32>
    %501 = vector.extract_strided_slice %499 {offsets = [0, 1], sizes = [1, 15], strides = [1, 1]} : vector<1x16xf32> to vector<1x15xf32>
    %502 = arith.maximumf %500, %501 : vector<1x15xf32>
    %cst_89 = arith.constant dense<0.000000e+00> : vector<1x8xf32>
    %503 = tpu.matmul %502, %34, %cst_89 {dimension_numbers = #tpu.dot_dimension_numbers<[1], [0], [0], [1], [0, 0, 1, 1], [], []>} : vector<1x15xf32>, vector<15x8xf32>, vector<1x8xf32> -> vector<1x8xf32>
    %c0_90 = arith.constant 0 : index
    %c7_91 = arith.constant 7 : index
    %c0_92 = arith.constant 0 : index
    %504 = vector.load %arg4[%c0_90, %c7_91, %c0_92] : memref<1x8x8xf32, #tpu.memory_space<vmem>>, vector<1x1x8xf32>
    %505 = vector.shape_cast %504 : vector<1x1x8xf32> to vector<1x8xf32>
    %506 = vector.shape_cast %503 : vector<1x8xf32> to vector<1x1x8xf32>
    tpu.vector_store %arg4[%c0_90, %c7_91, %c0_92], %506 {strides = array<i32>} : memref<1x8x8xf32, #tpu.memory_space<vmem>>, vector<1x1x8xf32>,
    return
  }
  func.func @transform_0(%arg0: i32) -> (i32, i32, i32) {
    %c0_i32 = arith.constant 0 : i32
    %c0_i32_0 = arith.constant 0 : i32
    %c0_i32_1 = arith.constant 0 : i32
    return %arg0, %c0_i32, %c0_i32_0 : i32, i32, i32
  }
  func.func @transform_1(%arg0: i32) -> i32 {
    %c0_i32 = arith.constant 0 : i32
    %c0_i32_0 = arith.constant 0 : i32
    return %c0_i32 : i32
  }
  func.func @transform_2(%arg0: i32) -> i32 {
    %c0_i32 = arith.constant 0 : i32
    %c0_i32_0 = arith.constant 0 : i32
    return %c0_i32 : i32
  }
  func.func @transform_3(%arg0: i32) -> (i32, i32, i32) {
    %c0_i32 = arith.constant 0 : i32
    %c0_i32_0 = arith.constant 0 : i32
    %c0_i32_1 = arith.constant 0 : i32
    return %arg0, %c0_i32, %c0_i32_0 : i32, i32, i32
  }
}

</mosaic_0001>

<llo_original>
// kernel: tpu_custom_call.1
$region0: #{tpu_custom_call.1}
  #allocation0 [shape = 'u32[]', space=smem, size = 0x4, offset = 0x4, fixed_abs, tag = 'smem constant byte address 0x4 - core index']
  #allocation1 [shape = 'u32[144,128]{1,0:T(1,128)}', space=vmem, size = 0x12000, scoped, tag = 'internal scratch']
  #allocation2 [shape = 'f32[1,4,18]{2,1,0:T(4,128)}', space=vmem, size = 0x800, scoped, tag = 'scratch operand']
  %s0 = inlined_call_operand.hbm [shape: f32[2,4,16], index: 0, kind: input, shape index: {}]
  %s1 = inlined_call_operand.vmem [shape: f32[96], index: 1, kind: input, shape index: {}]
  %s2 = inlined_call_operand.vmem [shape: f32[8], index: 2, kind: input, shape index: {}]
  %s3 = inlined_call_operand.hbm [shape: f32[2,8,8], index: 3, kind: output, shape index: {}]
  %s4 = sld [smem:[#allocation0]]
  $region57: #{tpu_custom_call.1} parent=0
    _
  %s6 = ssub.s32 1, %s4
  %s7 = scalar_select 0, %s6, %s4
  $region1: #{tpu_custom_call.1} parent=0
    #allocation3 [shape = 'u8[4096]{0}', space=vmem, size = 0x1000, scoped, tag = 'input window, operand 0']
    #allocation4 [shape = 's32[2]{0}', space=sflag, size = 0x8, scoped, tag = 'scoped memory for tpu_custom_call.1']
    #allocation5 [shape = 's32[2]{0}', space=sflag, size = 0x8, scoped, tag = 'scoped memory for tpu_custom_call.1']
    #allocation6 [shape = 's32[2]{0}', space=sflag, size = 0x8, scoped, tag = 'scoped memory for tpu_custom_call.1']
    #allocation7 [shape = 'u8[512]{0}', space=smem, size = 0x200, scoped, tag = 'input window, operand 1, single buffered']
    #allocation8 [shape = 'u8[512]{0}', space=smem, size = 0x200, scoped, tag = 'input window, operand 2, single buffered']
    #allocation9 [shape = 's32[1]{0}', space=sflag, size = 0x4, scoped, tag = 'scoped memory for tpu_custom_call.1']
    #allocation10 [shape = 'u8[8192]{0}', space=vmem, size = 0x2000, scoped, tag = 'output window, operand 0']
    %8 = vsyncpa [#allocation4], 0
    %s9 = scalar_lea.sflag [#allocation4], 1
    %10 = vsyncpa %s9, 0
    %11 = vsyncpa [#allocation6], 0
    %12 = vsyncpa [#allocation9], 0
    %13 = vsyncpa [#allocation5], 0
    %s14 = scalar_lea.sflag [#allocation5], 1
    %15 = vsyncpa %s14, 0
    loop: start=0, step=1, limit=4
    $region2: #{tpu_custom_call.1} parent=1 // loop_pre_header
      _
    $region3: #{tpu_custom_call.1} parent=1 // loop_header
      %s17 = sphi 0, %s21
      %p18 = scmp.ge.s32.totalorder %s17, 4
      %s27 = sphi 0, %s29
      %s30 = sphi 0, %s27
      %s31 = sphi 0, %s30
      %s47 = sphi 0, %s31
      %s51 = sphi 0, %s51
      %s53 = sphi 0, %s51
      %s54 = sphi 0, %s53
      %s68 = sphi 0, %s54
      %s72 = sphi 0, %s72
      %s74 = sphi 0, %s72
      %s75 = sphi 0, %s74
      %s89 = sphi 0, %s75
      %s95 = sphi 0, %s97
      %s98 = sphi 0, %s95
      %s99 = sphi 0, %s98
      %s115 = sphi 0, %s99
    $region4: #{tpu_custom_call.1} parent=1 // loop_header_branch
      %20 = sbr.rel (%p18) target = $region8
    $region5: #{tpu_custom_call.1} parent=1 // loop_body
      %s22 = ssub.s32 %s17, 1
      %s23 = ssub.s32 %s17, 2
      %s24 = sadd.s32 %s17, 1
      %s25 = ssub.s32 %s17, %s24
      %p26 = scmp.eq.s32.totalorder %s25, 0
      %s28 = sadd.s32 %s27, 1
      %s29 = scalar_select %p26, %s27, %s28
      %p32 = pneg %p26
      %p33 = scmp.eq.s32.totalorder %s17, 1
      %p34 = por %p32, %p33
      %p35 = scmp.ne.s32.totalorder %s27, %s30
      %p36 = scmp.eq.s32.totalorder %s17, 0
      %p37 = por %p35, %p36
      %p38 = scmp.ne.s32.totalorder %s27, %s30
      %p39 = scmp.eq.s32.totalorder %s22, 1
      %p40 = por %p38, %p39
      %p41 = scmp.ne.s32.totalorder %s30, %s31
      %p42 = scmp.eq.s32.totalorder %s22, 0
      %p43 = por %p41, %p42
      %p44 = scmp.ne.s32.totalorder %s30, %s31
      %p45 = scmp.eq.s32.totalorder %s23, 1
      %p46 = por %p44, %p45
      %p48 = scmp.ne.s32.totalorder %s31, %s47
      %p49 = scmp.eq.s32.totalorder %s23, 0
      %p50 = por %p48, %p49
      %s52 = sadd.s32 %s51, 1
      %p55 = scmp.eq.s32.totalorder %s17, 1
      %p56 = scmp.ne.s32.totalorder %s51, %s53
      %p57 = scmp.eq.s32.totalorder %s17, 0
      %p58 = por %p56, %p57
      %p59 = scmp.ne.s32.totalorder %s51, %s53
      %p60 = scmp.eq.s32.totalorder %s22, 1
      %p61 = por %p59, %p60
      %p62 = scmp.ne.s32.totalorder %s53, %s54
      %p63 = scmp.eq.s32.totalorder %s22, 0
      %p64 = por %p62, %p63
      %p65 = scmp.ne.s32.totalorder %s53, %s54
      %p66 = scmp.eq.s32.totalorder %s23, 1
      %p67 = por %p65, %p66
      %p69 = scmp.ne.s32.totalorder %s54, %s68
      %p70 = scmp.eq.s32.totalorder %s23, 0
      %p71 = por %p69, %p70
      %s73 = sadd.s32 %s72, 1
      %p76 = scmp.eq.s32.totalorder %s17, 1
      %p77 = scmp.ne.s32.totalorder %s72, %s74
      %p78 = scmp.eq.s32.totalorder %s17, 0
      %p79 = por %p77, %p78
      %p80 = scmp.ne.s32.totalorder %s72, %s74
      %p81 = scmp.eq.s32.totalorder %s22, 1
      %p82 = por %p80, %p81
      %p83 = scmp.ne.s32.totalorder %s74, %s75
      %p84 = scmp.eq.s32.totalorder %s22, 0
      %p85 = por %p83, %p84
      %p86 = scmp.ne.s32.totalorder %s74, %s75
      %p87 = scmp.eq.s32.totalorder %s23, 1
      %p88 = por %p86, %p87
      %p90 = scmp.ne.s32.totalorder %s75, %s89
      %p91 = scmp.eq.s32.totalorder %s23, 0
      %p92 = por %p90, %p91
      %s93 = ssub.s32 %s17, %s24
      %p94 = scmp.eq.s32.totalorder %s93, 0
      %s96 = sadd.s32 %s95, 1
      %s97 = scalar_select %p94, %s95, %s96
      %p100 = pneg %p94
      %p101 = scmp.eq.s32.totalorder %s17, 1
      %p102 = por %p100, %p101
      %p103 = scmp.ne.s32.totalorder %s95, %s98
      %p104 = scmp.eq.s32.totalorder %s17, 0
      %p105 = por %p103, %p104
      %p106 = scmp.ne.s32.totalorder %s95, %s98
      %p107 = scmp.eq.s32.totalorder %s22, 1
      %p108 = por %p106, %p107
      %p109 = scmp.ne.s32.totalorder %s98, %s99
      %p110 = scmp.eq.s32.totalorder %s22, 0
      %p111 = por %p109, %p110
      %p112 = scmp.ne.s32.totalorder %s98, %s99
      %p113 = scmp.eq.s32.totalorder %s23, 1
      %p114 = por %p112, %p113
      %p116 = scmp.ne.s32.totalorder %s99, %s115
      %p117 = scmp.eq.s32.totalorder %s23, 0
      %p118 = por %p116, %p117
      %p119 = scmp.le.s32.totalorder 1, %s17
      %p120 = scmp.lt.s32.totalorder %s17, 3
      %p121 = pnand %p119, %p120
      %p122 = pneg %p121
      // Predicated region
      $region9: #{tpu_custom_call.1} parent=5 // pred_check
        _
      $region10: #{tpu_custom_call.1} parent=5 // pred_check_branch
        %124 = sbr.rel (%p121) target = $region12
      $region11: #{tpu_custom_call.1} parent=5 // pred_region
        %s125 = ssub.s32 %s17, 1
        // Predicated region
        $region13: #{tpu_custom_call.1} parent=11 // pred_check
          %p126 = pneg %p64
        $region14: #{tpu_custom_call.1} parent=11 // pred_check_branch
          %128 = sbr.rel (%p126) target = $region16
        $region15: #{tpu_custom_call.1} parent=11 // pred_region
          %s130 = ssub.s32 16, 16
          %131 = vsyncadd [#allocation6], %s130
          %s133 = sshll.u32 %s1, 4
          %s134 = int_to_ptr.vmem [resolvable:$true] %s133
          %136 = dma.vmem_to_smem %s134, 16, [#allocation7], [#allocation6]
        $region16: #{tpu_custom_call.1} parent=11 // pred_fallthru
          _
        // Predicated region
        $region17: #{tpu_custom_call.1} parent=11 // pred_check
          %p137 = pneg %p85
        $region18: #{tpu_custom_call.1} parent=11 // pred_check_branch
          %139 = sbr.rel (%p137) target = $region20
        $region19: #{tpu_custom_call.1} parent=11 // pred_region
          %s141 = ssub.s32 16, 16
          %142 = vsyncadd [#allocation9], %s141
          %s144 = sshll.u32 %s2, 4
          %s145 = int_to_ptr.vmem [resolvable:$true] %s144
          %147 = dma.vmem_to_smem %s145, 16, [#allocation8], [#allocation9]
        $region20: #{tpu_custom_call.1} parent=11 // pred_fallthru
          _
      $region12: #{tpu_custom_call.1} parent=5 // pred_fallthru
        _
      %p148 = scmp.lt.s32.totalorder %s17, 2
      // Predicated region
      $region21: #{tpu_custom_call.1} parent=5 // pred_check
        %p149 = pneg %p148
      $region22: #{tpu_custom_call.1} parent=5 // pred_check_branch
        %151 = sbr.rel (%p149) target = $region24
      $region23: #{tpu_custom_call.1} parent=5 // pred_region
        // Predicated region
        $region25: #{tpu_custom_call.1} parent=23 // pred_check
          %p152 = pneg %p37
        $region26: #{tpu_custom_call.1} parent=23 // pred_check_branch
          %154 = sbr.rel (%p152) target = $region28
        $region27: #{tpu_custom_call.1} parent=23 // pred_region
          %s155 = sand.u32 %s27, 1
          %s156 = scalar_lea.sflag [#allocation4], %s155
          %s157 = sand.u32 %s27, 1
          %s158 = smul.addr %s157, 4
          %s159 = scalar_lea.vmem [#allocation3], %s158
          %s161 = ssub.s32 64, 64
          %162 = vsyncadd %s156, %s161
          %s163 = smul.addr %s17, 64
          %s164 = scalar_lea.hbm %s0, %s163
          %s166 = sshll.u32 %s159, 4
          %s167 = int_to_ptr.vmem [resolvable:$true] %s166
          %169 = dma.hbm_to_vmem [thread:$0]  %s164, 64, %s167, %s156
        $region28: #{tpu_custom_call.1} parent=23 // pred_fallthru
          _
      $region24: #{tpu_custom_call.1} parent=5 // pred_fallthru
        _
      %p170 = scmp.le.s32.totalorder 1, %s17
      %p171 = scmp.lt.s32.totalorder %s17, 3
      %p172 = pnand %p170, %p171
      %p173 = pneg %p172
      // Predicated region
      $region29: #{tpu_custom_call.1} parent=5 // pred_check
        _
      $region30: #{tpu_custom_call.1} parent=5 // pred_check_branch
        %175 = sbr.rel (%p172) target = $region32
      $region31: #{tpu_custom_call.1} parent=5 // pred_region
        %s176 = ssub.s32 %s17, 1
        %s177 = sand.u32 %s30, 1
        %s178 = scalar_lea.sflag [#allocation4], %s177
        %s179 = sand.u32 %s30, 1
        %s180 = smul.addr %s179, 4
        %s181 = scalar_lea.vmem [#allocation3], %s180
        // Predicated region
        $region33: #{tpu_custom_call.1} parent=31 // pred_check
          %p182 = pneg %p43
        $region34: #{tpu_custom_call.1} parent=31 // pred_check_branch
          %184 = sbr.rel (%p182) target = $region36
        $region35: #{tpu_custom_call.1} parent=31 // pred_region
          %185 = dma.done %s178, 64
        $region36: #{tpu_custom_call.1} parent=31 // pred_fallthru
          _
        // Predicated region
        $region37: #{tpu_custom_call.1} parent=31 // pred_check
          %p186 = pneg %p64
        $region38: #{tpu_custom_call.1} parent=31 // pred_check_branch
          %188 = sbr.rel (%p186) target = $region40
        $region39: #{tpu_custom_call.1} parent=31 // pred_region
          %189 = dma.done [#allocation6], 16
        $region40: #{tpu_custom_call.1} parent=31 // pred_fallthru
          _
        // Predicated region
        $region41: #{tpu_custom_call.1} parent=31 // pred_check
          %p190 = pneg %p85
        $region42: #{tpu_custom_call.1} parent=31 // pred_check_branch
          %192 = sbr.rel (%p190) target = $region44
        $region43: #{tpu_custom_call.1} parent=31 // pred_region
          %193 = dma.done [#allocation9], 16
        $region44: #{tpu_custom_call.1} parent=31 // pred_fallthru
          _
        %194 = sfence
        %s195 = sand.u32 %s30, 1
        %s196 = scalar_lea.sflag [#allocation4], %s195
        %s197 = sand.u32 %s30, 1
        %s198 = smul.addr %s197, 4
        %s199 = scalar_lea.vmem [#allocation3], %s198
        %p200 = pneg %p43
        %p201 = pneg %p40
        %p202 = pneg %p64
        %p203 = pneg %p61
        %p204 = pneg %p85
        %p205 = pneg %p82
        %p206 = pneg %p111
        %p207 = pneg %p108
        %s208 = sand.u32 %s98, 1
        %s209 = scalar_lea.sflag [#allocation5], %s208
        %s210 = sand.u32 %s98, 1
        %s211 = smul.addr %s210, 8
        %s212 = scalar_lea.vmem [#allocation10], %s211
        %vm213 = vcmask 142336
        %214 = vst.msk [vmem:[#allocation2] sm:$0xf] %vm213, 0.0
        %v215 = vld [vmem:[%s181] sm:$0xf]
        %217 = vrot.lane.b32.xlu0 %v215, 1
        %v218 = vpop.permute.xlu0 %217
        %vm220 = vcmask 134152
        %221 = vst.msk [vmem:[#allocation2] sm:$0xf] %vm220, %v218
        %v222 = vld [vmem:[#allocation2] sm:$0x1]
        %v223 = vld [vmem:[#allocation2 + $0x1] sm:$0x1]
        %v224 = vld [vmem:[#allocation2 + $0x2] sm:$0x1]
        %v225 = vld [vmem:[#allocation2 + $0x3] sm:$0x1]
        %v226 = vlaneseq
        %v227 = vshrl.u32 %v226, 7
        %v228 = vadd.s32 %v227, 8
        %v229 = vlaneseq
        %v230 = vand.u32 %v229, 127
        %v231 = vmul.u32 %v230, 2
        %vm232 = vcmp.eq.s32.totalorder %v227, %v231
        %vm233 = vcmp.eq.s32.totalorder %v228, %v231
        %v234 = vsel %vm232, 1, 0
        %v235 = vsel %vm233, 1, 0
        %v236 = vcvt.s32.f32 %v234
        %v237 = vcvt.s32.f32 %v235
        %s238 = sld [smem:[#allocation7]]
        %v239 = vstv %s238
        %v240 = vmul.f32 %v239, %v222
        %s241 = sld [smem:[#allocation7 + $0x1]]
        %v242 = vstv %s241
        %v243 = vmul.f32 %v242, %v222
        %245 = vrot.lane.b32.xlu0 %v243, 127
        %v246 = vpop.permute.xlu0 %245
        %v248 = vadd.f32 %v240, %v246
        %s249 = sld [smem:[#allocation7 + $0x2]]
        %v250 = vstv %s249
        %v251 = vmul.f32 %v250, %v222
        %253 = vrot.lane.b32.xlu0 %v251, 126
        %v254 = vpop.permute.xlu0 %253
        %v256 = vadd.f32 %v248, %v254
        %s257 = sld [smem:[#allocation7 + $0x3]]
        %v258 = vstv %s257
        %v259 = vmul.f32 %v258, %v223
        %v260 = vadd.f32 %v256, %v259
        %s261 = sld [smem:[#allocation7 + $0x4]]
        %v262 = vstv %s261
        %v263 = vmul.f32 %v262, %v223
        %265 = vrot.lane.b32.xlu0 %v263, 127
        %v266 = vpop.permute.xlu0 %265
        %v268 = vadd.f32 %v260, %v266
        %s269 = sld [smem:[#allocation7 + $0x5]]
        %v270 = vstv %s269
        %v271 = vmul.f32 %v270, %v223
        %273 = vrot.lane.b32.xlu0 %v271, 126
        %v274 = vpop.permute.xlu0 %273
        %v276 = vadd.f32 %v268, %v274
        %s277 = sld [smem:[#allocation7 + $0x6]]
        %v278 = vstv %s277
        %v279 = vmul.f32 %v278, %v224
        %v280 = vadd.f32 %v276, %v279
        %s281 = sld [smem:[#allocation7 + $0x7]]
        %v282 = vstv %s281
        %v283 = vmul.f32 %v282, %v224
        %285 = vrot.lane.b32.xlu0 %v283, 127
        %v286 = vpop.permute.xlu0 %285
        %v288 = vadd.f32 %v280, %v286
        %s289 = sld [smem:[#allocation7 + $0x8]]
        %v290 = vstv %s289
        %v291 = vmul.f32 %v290, %v224
        %293 = vrot.lane.b32.xlu0 %v291, 126
        %v294 = vpop.permute.xlu0 %293
        %v296 = vadd.f32 %v288, %v294
        %s297 = sld [smem:[#allocation7 + $0x9]]
        %v298 = vstv %s297
        %v299 = vmul.f32 %v298, %v225
        %v300 = vadd.f32 %v296, %v299
        %s301 = sld [smem:[#allocation7 + $0xa]]
        %v302 = vstv %s301
        %v303 = vmul.f32 %v302, %v225
        %305 = vrot.lane.b32.xlu0 %v303, 127
        %v306 = vpop.permute.xlu0 %305
        %v308 = vadd.f32 %v300, %v306
        %s309 = sld [smem:[#allocation7 + $0xb]]
        %v310 = vstv %s309
        %v311 = vmul.f32 %v310, %v225
        %313 = vrot.lane.b32.xlu0 %v311, 126
        %v314 = vpop.permute.xlu0 %313
        %v316 = vadd.f32 %v308, %v314
        %s317 = sld [smem:[#allocation8]]
        %v318 = vstv %s317
        %v319 = vadd.f32 %v316, %v318
        %v320 = vmax.f32 %v319, 0.0
        %322 = vrot.lane.b32.xlu0 %v320, 127
        %v323 = vpop.permute.xlu0 %322
        %v325 = vmax.f32 %v320, %v323
        %vm326 = vcmask 121856
        %v328 = vsel %vm326, %v325, 0
        %vm330 = vcmask 1046528
        %v332 = vsel %vm330, %v237, 0
        %334 = vmatprep.subr.mxu0 0.0
        %335 = vmatpush1.msra.mxu0 %v236
        %336 = vmatprep.subr.mxu0 0.0
        %337 = vmatpush1.msra.mxu0 %v332
        %338 = vmatprep.subr.mxu0 0.0
        %339 = vmatpush1.msra.mxu0 0.0
        %340 = vmatprep.subr.mxu0 0.0
        %341 = vmatpush1.msra.mxu0 0.0
        %342 = vmatprep.subr.mxu0 0.0
        %343 = vmatpush1.msra.mxu0 0.0
        %344 = vmatprep.subr.mxu0 0.0
        %345 = vmatpush1.msra.mxu0 0.0
        %346 = vmatprep.subr.mxu0 0.0
        %347 = vmatpush1.msra.mxu0 0.0
        %348 = vmatprep.subr.mxu0 0.0
        %349 = vmatpush1.msra.mxu0 0.0
        %350 = vmatprep.subr.mxu0 0.0
        %351 = vmatpush1.msra.mxu0 0.0
        %352 = vmatprep.subr.mxu0 0.0
        %353 = vmatpush1.msra.mxu0 0.0
        %354 = vmatprep.subr.mxu0 0.0
        %355 = vmatpush1.msra.mxu0 0.0
        %356 = vmatprep.subr.mxu0 0.0
        %357 = vmatpush1.msra.mxu0 0.0
        %358 = vmatprep.subr.mxu0 0.0
        %359 = vmatpush1.msra.mxu0 0.0
        %360 = vmatprep.subr.mxu0 0.0
        %361 = vmatpush1.msra.mxu0 0.0
        %362 = vmatprep.subr.mxu0 0.0
        %363 = vmatpush1.msra.mxu0 0.0
        %364 = vmatprep.subr.mxu0 0.0
        %365 = vmatpush1.msra.mxu0 0.0
        %366 = vmatprep.subr.mxu0 0.0
        %367 = vmatpush1.msra.mxu0 0.0
        %368 = vmatprep.subr.mxu0 0.0
        %369 = vmatpush1.msra.mxu0 0.0
        %370 = vmatprep.subr.mxu0 0.0
        %371 = vmatpush1.msra.mxu0 0.0
        %372 = vmatprep.subr.mxu0 0.0
        %373 = vmatpush1.msra.mxu0 0.0
        %374 = vmatprep.subr.mxu0 0.0
        %375 = vmatpush1.msra.mxu0 0.0
        %376 = vmatprep.subr.mxu0 0.0
        %377 = vmatpush1.msra.mxu0 0.0
        %378 = vmatprep.subr.mxu0 0.0
        %379 = vmatpush1.msra.mxu0 0.0
        %380 = vmatprep.subr.mxu0 0.0
        %381 = vmatpush1.msra.mxu0 0.0
        %382 = vmatprep.subr.mxu0 0.0
        %383 = vmatpush1.msra.mxu0 0.0
        %384 = vmatprep.subr.mxu0 0.0
        %385 = vmatpush1.msra.mxu0 0.0
        %386 = vmatprep.subr.mxu0 0.0
        %387 = vmatpush1.msra.mxu0 0.0
        %388 = vmatprep.subr.mxu0 0.0
        %389 = vmatpush1.msra.mxu0 0.0
        %390 = vmatprep.subr.mxu0 0.0
        %391 = vmatpush1.msra.mxu0 0.0
        %392 = vmatprep.subr.mxu0 0.0
        %393 = vmatpush1.msra.mxu0 0.0
        %394 = vmatprep.subr.mxu0 0.0
        %395 = vmatpush1.msra.mxu0 0.0
        %396 = vmatprep.subr.mxu0 0.0
        %397 = vmatpush1.msra.mxu0 0.0
        %398 = vmatprep.mubr.f32.mxu0 0.0
        %399 = vmatmul.mubr.f32.gmra.mrb[0].mxu0 %v328
        %v400 = vpop.f32.mrb[0].mxu0
        %v401 = vadd.f32 0.0, %v400
        %v402 = vpop.f32.mrb[0].mxu0
        %403 = vdwg.mxu0
        %vm404 = vcmask 57344
        %405 = vst.msk [vmem:[%s212] sm:$0x1] %vm404, %v401
        %s406 = sld [smem:[#allocation7 + $0xc]]
        %v407 = vstv %s406
        %v408 = vmul.f32 %v407, %v222
        %s409 = sld [smem:[#allocation7 + $0xd]]
        %v410 = vstv %s409
        %v411 = vmul.f32 %v410, %v222
        %413 = vrot.lane.b32.xlu0 %v411, 127
        %v414 = vpop.permute.xlu0 %413
        %v416 = vadd.f32 %v408, %v414
        %s417 = sld [smem:[#allocation7 + $0xe]]
        %v418 = vstv %s417
        %v419 = vmul.f32 %v418, %v222
        %421 = vrot.lane.b32.xlu0 %v419, 126
        %v422 = vpop.permute.xlu0 %421
        %v424 = vadd.f32 %v416, %v422
        %s425 = sld [smem:[#allocation7 + $0xf]]
        %v426 = vstv %s425
        %v427 = vmul.f32 %v426, %v223
        %v428 = vadd.f32 %v424, %v427
        %s429 = sld [smem:[#allocation7 + $0x10]]
        %v430 = vstv %s429
        %v431 = vmul.f32 %v430, %v223
        %433 = vrot.lane.b32.xlu0 %v431, 127
        %v434 = vpop.permute.xlu0 %433
        %v436 = vadd.f32 %v428, %v434
        %s437 = sld [smem:[#allocation7 + $0x11]]
        %v438 = vstv %s437
        %v439 = vmul.f32 %v438, %v223
        %441 = vrot.lane.b32.xlu0 %v439, 126
        %v442 = vpop.permute.xlu0 %441
        %v444 = vadd.f32 %v436, %v442
        %s445 = sld [smem:[#allocation7 + $0x12]]
        %v446 = vstv %s445
        %v447 = vmul.f32 %v446, %v224
        %v448 = vadd.f32 %v444, %v447
        %s449 = sld [smem:[#allocation7 + $0x13]]
        %v450 = vstv %s449
        %v451 = vmul.f32 %v450, %v224
        %453 = vrot.lane.b32.xlu0 %v451, 127
        %v454 = vpop.permute.xlu0 %453
        %v456 = vadd.f32 %v448, %v454
        %s457 = sld [smem:[#allocation7 + $0x14]]
        %v458 = vstv %s457
        %v459 = vmul.f32 %v458, %v224
        %461 = vrot.lane.b32.xlu0 %v459, 126
        %v462 = vpop.permute.xlu0 %461
        %v464 = vadd.f32 %v456, %v462
        %s465 = sld [smem:[#allocation7 + $0x15]]
        %v466 = vstv %s465
        %v467 = vmul.f32 %v466, %v225
        %v468 = vadd.f32 %v464, %v467
        %s469 = sld [smem:[#allocation7 + $0x16]]
        %v470 = vstv %s469
        %v471 = vmul.f32 %v470, %v225
        %473 = vrot.lane.b32.xlu0 %v471, 127
        %v474 = vpop.permute.xlu0 %473
        %v476 = vadd.f32 %v468, %v474
        %s477 = sld [smem:[#allocation7 + $0x17]]
        %v478 = vstv %s477
        %v479 = vmul.f32 %v478, %v225
        %481 = vrot.lane.b32.xlu0 %v479, 126
        %v482 = vpop.permute.xlu0 %481
        %v484 = vadd.f32 %v476, %v482
        %s485 = sld [smem:[#allocation8 + $0x1]]
        %v486 = vstv %s485
        %v487 = vadd.f32 %v484, %v486
        %v488 = vmax.f32 %v487, 0.0
        %490 = vrot.lane.b32.xlu0 %v488, 127
        %v491 = vpop.permute.xlu0 %490
        %v493 = vmax.f32 %v488, %v491
        %v495 = vsel %vm326, %v493, 0
        %497 = vmatprep.subr.mxu0 0.0
        %498 = vmatpush1.msra.mxu0 %v236
        %499 = vmatprep.subr.mxu0 0.0
        %500 = vmatpush1.msra.mxu0 %v332
        %501 = vmatprep.subr.mxu0 0.0
        %502 = vmatpush1.msra.mxu0 0.0
        %503 = vmatprep.subr.mxu0 0.0
        %504 = vmatpush1.msra.mxu0 0.0
        %505 = vmatprep.subr.mxu0 0.0
        %506 = vmatpush1.msra.mxu0 0.0
        %507 = vmatprep.subr.mxu0 0.0
        %508 = vmatpush1.msra.mxu0 0.0
        %509 = vmatprep.subr.mxu0 0.0
        %510 = vmatpush1.msra.mxu0 0.0
        %511 = vmatprep.subr.mxu0 0.0
        %512 = vmatpush1.msra.mxu0 0.0
        %513 = vmatprep.subr.mxu0 0.0
        %514 = vmatpush1.msra.mxu0 0.0
        %515 = vmatprep.subr.mxu0 0.0
        %516 = vmatpush1.msra.mxu0 0.0
        %517 = vmatprep.subr.mxu0 0.0
        %518 = vmatpush1.msra.mxu0 0.0
        %519 = vmatprep.subr.mxu0 0.0
        %520 = vmatpush1.msra.mxu0 0.0
        %521 = vmatprep.subr.mxu0 0.0
        %522 = vmatpush1.msra.mxu0 0.0
        %523 = vmatprep.subr.mxu0 0.0
        %524 = vmatpush1.msra.mxu0 0.0
        %525 = vmatprep.subr.mxu0 0.0
        %526 = vmatpush1.msra.mxu0 0.0
        %527 = vmatprep.subr.mxu0 0.0
        %528 = vmatpush1.msra.mxu0 0.0
        %529 = vmatprep.subr.mxu0 0.0
        %530 = vmatpush1.msra.mxu0 0.0
        %531 = vmatprep.subr.mxu0 0.0
        %532 = vmatpush1.msra.mxu0 0.0
        %533 = vmatprep.subr.mxu0 0.0
        %534 = vmatpush1.msra.mxu0 0.0
        %535 = vmatprep.subr.mxu0 0.0
        %536 = vmatpush1.msra.mxu0 0.0
        %537 = vmatprep.subr.mxu0 0.0
        %538 = vmatpush1.msra.mxu0 0.0
        %539 = vmatprep.subr.mxu0 0.0
        %540 = vmatpush1.msra.mxu0 0.0
        %541 = vmatprep.subr.mxu0 0.0
        %542 = vmatpush1.msra.mxu0 0.0
        %543 = vmatprep.subr.mxu0 0.0
        %544 = vmatpush1.msra.mxu0 0.0
        %545 = vmatprep.subr.mxu0 0.0
        %546 = vmatpush1.msra.mxu0 0.0
        %547 = vmatprep.subr.mxu0 0.0
        %548 = vmatpush1.msra.mxu0 0.0
        %549 = vmatprep.subr.mxu0 0.0
        %550 = vmatpush1.msra.mxu0 0.0
        %551 = vmatprep.subr.mxu0 0.0
        %552 = vmatpush1.msra.mxu0 0.0
        %553 = vmatprep.subr.mxu0 0.0
        %554 = vmatpush1.msra.mxu0 0.0
        %555 = vmatprep.subr.mxu0 0.0
        %556 = vmatpush1.msra.mxu0 0.0
        %557 = vmatprep.subr.mxu0 0.0
        %558 = vmatpush1.msra.mxu0 0.0
        %559 = vmatprep.subr.mxu0 0.0
        %560 = vmatpush1.msra.mxu0 0.0
        %561 = vmatprep.mubr.f32.mxu0 0.0
        %562 = vmatmul.mubr.f32.gmra.mrb[0].mxu0 %v495
        %v563 = vpop.f32.mrb[0].mxu0
        %v564 = vadd.f32 0.0, %v563
        %v565 = vpop.f32.mrb[0].mxu0
        %566 = vdwg.mxu0
        %567 = vst.msk [vmem:[%s212 + $0x1] sm:$0x1] %vm404, %v564
        %s568 = sld [smem:[#allocation7 + $0x18]]
        %v569 = vstv %s568
        %v570 = vmul.f32 %v569, %v222
        %s571 = sld [smem:[#allocation7 + $0x19]]
        %v572 = vstv %s571
        %v573 = vmul.f32 %v572, %v222
        %575 = vrot.lane.b32.xlu0 %v573, 127
        %v576 = vpop.permute.xlu0 %575
        %v578 = vadd.f32 %v570, %v576
        %s579 = sld [smem:[#allocation7 + $0x1a]]
        %v580 = vstv %s579
        %v581 = vmul.f32 %v580, %v222
        %583 = vrot.lane.b32.xlu0 %v581, 126
        %v584 = vpop.permute.xlu0 %583
        %v586 = vadd.f32 %v578, %v584
        %s587 = sld [smem:[#allocation7 + $0x1b]]
        %v588 = vstv %s587
        %v589 = vmul.f32 %v588, %v223
        %v590 = vadd.f32 %v586, %v589
        %s591 = sld [smem:[#allocation7 + $0x1c]]
        %v592 = vstv %s591
        %v593 = vmul.f32 %v592, %v223
        %595 = vrot.lane.b32.xlu0 %v593, 127
        %v596 = vpop.permute.xlu0 %595
        %v598 = vadd.f32 %v590, %v596
        %s599 = sld [smem:[#allocation7 + $0x1d]]
        %v600 = vstv %s599
        %v601 = vmul.f32 %v600, %v223
        %603 = vrot.lane.b32.xlu0 %v601, 126
        %v604 = vpop.permute.xlu0 %603
        %v606 = vadd.f32 %v598, %v604
        %s607 = sld [smem:[#allocation7 + $0x1e]]
        %v608 = vstv %s607
        %v609 = vmul.f32 %v608, %v224
        %v610 = vadd.f32 %v606, %v609
        %s611 = sld [smem:[#allocation7 + $0x1f]]
        %v612 = vstv %s611
        %v613 = vmul.f32 %v612, %v224
        %615 = vrot.lane.b32.xlu0 %v613, 127
        %v616 = vpop.permute.xlu0 %615
        %v618 = vadd.f32 %v610, %v616
        %s619 = sld [smem:[#allocation7 + $0x20]]
        %v620 = vstv %s619
        %v621 = vmul.f32 %v620, %v224
        %623 = vrot.lane.b32.xlu0 %v621, 126
        %v624 = vpop.permute.xlu0 %623
        %v626 = vadd.f32 %v618, %v624
        %s627 = sld [smem:[#allocation7 + $0x21]]
        %v628 = vstv %s627
        %v629 = vmul.f32 %v628, %v225
        %v630 = vadd.f32 %v626, %v629
        %s631 = sld [smem:[#allocation7 + $0x22]]
        %v632 = vstv %s631
        %v633 = vmul.f32 %v632, %v225
        %635 = vrot.lane.b32.xlu0 %v633, 127
        %v636 = vpop.permute.xlu0 %635
        %v638 = vadd.f32 %v630, %v636
        %s639 = sld [smem:[#allocation7 + $0x23]]
        %v640 = vstv %s639
        %v641 = vmul.f32 %v640, %v225
        %643 = vrot.lane.b32.xlu0 %v641, 126
        %v644 = vpop.permute.xlu0 %643
        %v646 = vadd.f32 %v638, %v644
        %s647 = sld [smem:[#allocation8 + $0x2]]
        %v648 = vstv %s647
        %v649 = vadd.f32 %v646, %v648
        %v650 = vmax.f32 %v649, 0.0
        %652 = vrot.lane.b32.xlu0 %v650, 127
        %v653 = vpop.permute.xlu0 %652
        %v655 = vmax.f32 %v650, %v653
        %v657 = vsel %vm326, %v655, 0
        %659 = vmatprep.subr.mxu0 0.0
        %660 = vmatpush1.msra.mxu0 %v236
        %661 = vmatprep.subr.mxu0 0.0
        %662 = vmatpush1.msra.mxu0 %v332
        %663 = vmatprep.subr.mxu0 0.0
        %664 = vmatpush1.msra.mxu0 0.0
        %665 = vmatprep.subr.mxu0 0.0
        %666 = vmatpush1.msra.mxu0 0.0
        %667 = vmatprep.subr.mxu0 0.0
        %668 = vmatpush1.msra.mxu0 0.0
        %669 = vmatprep.subr.mxu0 0.0
        %670 = vmatpush1.msra.mxu0 0.0
        %671 = vmatprep.subr.mxu0 0.0
        %672 = vmatpush1.msra.mxu0 0.0
        %673 = vmatprep.subr.mxu0 0.0
        %674 = vmatpush1.msra.mxu0 0.0
        %675 = vmatprep.subr.mxu0 0.0
        %676 = vmatpush1.msra.mxu0 0.0
        %677 = vmatprep.subr.mxu0 0.0
        %678 = vmatpush1.msra.mxu0 0.0
        %679 = vmatprep.subr.mxu0 0.0
        %680 = vmatpush1.msra.mxu0 0.0
        %681 = vmatprep.subr.mxu0 0.0
        %682 = vmatpush1.msra.mxu0 0.0
        %683 = vmatprep.subr.mxu0 0.0
        %684 = vmatpush1.msra.mxu0 0.0
        %685 = vmatprep.subr.mxu0 0.0
        %686 = vmatpush1.msra.mxu0 0.0
        %687 = vmatprep.subr.mxu0 0.0
        %688 = vmatpush1.msra.mxu0 0.0
        %689 = vmatprep.subr.mxu0 0.0
        %690 = vmatpush1.msra.mxu0 0.0
        %691 = vmatprep.subr.mxu0 0.0
        %692 = vmatpush1.msra.mxu0 0.0
        %693 = vmatprep.subr.mxu0 0.0
        %694 = vmatpush1.msra.mxu0 0.0
        %695 = vmatprep.subr.mxu0 0.0
        %696 = vmatpush1.msra.mxu0 0.0
        %697 = vmatprep.subr.mxu0 0.0
        %698 = vmatpush1.msra.mxu0 0.0
        %699 = vmatprep.subr.mxu0 0.0
        %700 = vmatpush1.msra.mxu0 0.0
        %701 = vmatprep.subr.mxu0 0.0
        %702 = vmatpush1.msra.mxu0 0.0
        %703 = vmatprep.subr.mxu0 0.0
        %704 = vmatpush1.msra.mxu0 0.0
        %705 = vmatprep.subr.mxu0 0.0
        %706 = vmatpush1.msra.mxu0 0.0
        %707 = vmatprep.subr.mxu0 0.0
        %708 = vmatpush1.msra.mxu0 0.0
        %709 = vmatprep.subr.mxu0 0.0
        %710 = vmatpush1.msra.mxu0 0.0
        %711 = vmatprep.subr.mxu0 0.0
        %712 = vmatpush1.msra.mxu0 0.0
        %713 = vmatprep.subr.mxu0 0.0
        %714 = vmatpush1.msra.mxu0 0.0
        %715 = vmatprep.subr.mxu0 0.0
        %716 = vmatpush1.msra.mxu0 0.0
        %717 = vmatprep.subr.mxu0 0.0
        %718 = vmatpush1.msra.mxu0 0.0
        %719 = vmatprep.subr.mxu0 0.0
        %720 = vmatpush1.msra.mxu0 0.0
        %721 = vmatprep.subr.mxu0 0.0
        %722 = vmatpush1.msra.mxu0 0.0
        %723 = vmatprep.mubr.f32.mxu0 0.0
        %724 = vmatmul.mubr.f32.gmra.mrb[0].mxu0 %v657
        %v725 = vpop.f32.mrb[0].mxu0
        %v726 = vadd.f32 0.0, %v725
        %v727 = vpop.f32.mrb[0].mxu0
        %728 = vdwg.mxu0
        %729 = vst.msk [vmem:[%s212 + $0x2] sm:$0x1] %vm404, %v726
        %s730 = sld [smem:[#allocation7 + $0x24]]
        %v731 = vstv %s730
        %v732 = vmul.f32 %v731, %v222
        %s733 = sld [smem:[#allocation7 + $0x25]]
        %v734 = vstv %s733
        %v735 = vmul.f32 %v734, %v222
        %737 = vrot.lane.b32.xlu0 %v735, 127
        %v738 = vpop.permute.xlu0 %737
        %v740 = vadd.f32 %v732, %v738
        %s741 = sld [smem:[#allocation7 + $0x26]]
        %v742 = vstv %s741
        %v743 = vmul.f32 %v742, %v222
        %745 = vrot.lane.b32.xlu0 %v743, 126
        %v746 = vpop.permute.xlu0 %745
        %v748 = vadd.f32 %v740, %v746
        %s749 = sld [smem:[#allocation7 + $0x27]]
        %v750 = vstv %s749
        %v751 = vmul.f32 %v750, %v223
        %v752 = vadd.f32 %v748, %v751
        %s753 = sld [smem:[#allocation7 + $0x28]]
        %v754 = vstv %s753
        %v755 = vmul.f32 %v754, %v223
        %757 = vrot.lane.b32.xlu0 %v755, 127
        %v758 = vpop.permute.xlu0 %757
        %v760 = vadd.f32 %v752, %v758
        %s761 = sld [smem:[#allocation7 + $0x29]]
        %v762 = vstv %s761
        %v763 = vmul.f32 %v762, %v223
        %765 = vrot.lane.b32.xlu0 %v763, 126
        %v766 = vpop.permute.xlu0 %765
        %v768 = vadd.f32 %v760, %v766
        %s769 = sld [smem:[#allocation7 + $0x2a]]
        %v770 = vstv %s769
        %v771 = vmul.f32 %v770, %v224
        %v772 = vadd.f32 %v768, %v771
        %s773 = sld [smem:[#allocation7 + $0x2b]]
        %v774 = vstv %s773
        %v775 = vmul.f32 %v774, %v224
        %777 = vrot.lane.b32.xlu0 %v775, 127
        %v778 = vpop.permute.xlu0 %777
        %v780 = vadd.f32 %v772, %v778
        %s781 = sld [smem:[#allocation7 + $0x2c]]
        %v782 = vstv %s781
        %v783 = vmul.f32 %v782, %v224
        %785 = vrot.lane.b32.xlu0 %v783, 126
        %v786 = vpop.permute.xlu0 %785
        %v788 = vadd.f32 %v780, %v786
        %s789 = sld [smem:[#allocation7 + $0x2d]]
        %v790 = vstv %s789
        %v791 = vmul.f32 %v790, %v225
        %v792 = vadd.f32 %v788, %v791
        %s793 = sld [smem:[#allocation7 + $0x2e]]
        %v794 = vstv %s793
        %v795 = vmul.f32 %v794, %v225
        %797 = vrot.lane.b32.xlu0 %v795, 127
        %v798 = vpop.permute.xlu0 %797
        %v800 = vadd.f32 %v792, %v798
        %s801 = sld [smem:[#allocation7 + $0x2f]]
        %v802 = vstv %s801
        %v803 = vmul.f32 %v802, %v225
        %805 = vrot.lane.b32.xlu0 %v803, 126
        %v806 = vpop.permute.xlu0 %805
        %v808 = vadd.f32 %v800, %v806
        %s809 = sld [smem:[#allocation8 + $0x3]]
        %v810 = vstv %s809
        %v811 = vadd.f32 %v808, %v810
        %v812 = vmax.f32 %v811, 0.0
        %814 = vrot.lane.b32.xlu0 %v812, 127
        %v815 = vpop.permute.xlu0 %814
        %v817 = vmax.f32 %v812, %v815
        %v819 = vsel %vm326, %v817, 0
        %821 = vmatprep.subr.mxu0 0.0
        %822 = vmatpush1.msra.mxu0 %v236
        %823 = vmatprep.subr.mxu0 0.0
        %824 = vmatpush1.msra.mxu0 %v332
        %825 = vmatprep.subr.mxu0 0.0
        %826 = vmatpush1.msra.mxu0 0.0
        %827 = vmatprep.subr.mxu0 0.0
        %828 = vmatpush1.msra.mxu0 0.0
        %829 = vmatprep.subr.mxu0 0.0
        %830 = vmatpush1.msra.mxu0 0.0
        %831 = vmatprep.subr.mxu0 0.0
        %832 = vmatpush1.msra.mxu0 0.0
        %833 = vmatprep.subr.mxu0 0.0
        %834 = vmatpush1.msra.mxu0 0.0
        %835 = vmatprep.subr.mxu0 0.0
        %836 = vmatpush1.msra.mxu0 0.0
        %837 = vmatprep.subr.mxu0 0.0
        %838 = vmatpush1.msra.mxu0 0.0
        %839 = vmatprep.subr.mxu0 0.0
        %840 = vmatpush1.msra.mxu0 0.0
        %841 = vmatprep.subr.mxu0 0.0
        %842 = vmatpush1.msra.mxu0 0.0
        %843 = vmatprep.subr.mxu0 0.0
        %844 = vmatpush1.msra.mxu0 0.0
        %845 = vmatprep.subr.mxu0 0.0
        %846 = vmatpush1.msra.mxu0 0.0
        %847 = vmatprep.subr.mxu0 0.0
        %848 = vmatpush1.msra.mxu0 0.0
        %849 = vmatprep.subr.mxu0 0.0
        %850 = vmatpush1.msra.mxu0 0.0
        %851 = vmatprep.subr.mxu0 0.0
        %852 = vmatpush1.msra.mxu0 0.0
        %853 = vmatprep.subr.mxu0 0.0
        %854 = vmatpush1.msra.mxu0 0.0
        %855 = vmatprep.subr.mxu0 0.0
        %856 = vmatpush1.msra.mxu0 0.0
        %857 = vmatprep.subr.mxu0 0.0
        %858 = vmatpush1.msra.mxu0 0.0
        %859 = vmatprep.subr.mxu0 0.0
        %860 = vmatpush1.msra.mxu0 0.0
        %861 = vmatprep.subr.mxu0 0.0
        %862 = vmatpush1.msra.mxu0 0.0
        %863 = vmatprep.subr.mxu0 0.0
        %864 = vmatpush1.msra.mxu0 0.0
        %865 = vmatprep.subr.mxu0 0.0
        %866 = vmatpush1.msra.mxu0 0.0
        %867 = vmatprep.subr.mxu0 0.0
        %868 = vmatpush1.msra.mxu0 0.0
        %869 = vmatprep.subr.mxu0 0.0
        %870 = vmatpush1.msra.mxu0 0.0
        %871 = vmatprep.subr.mxu0 0.0
        %872 = vmatpush1.msra.mxu0 0.0
        %873 = vmatprep.subr.mxu0 0.0
        %874 = vmatpush1.msra.mxu0 0.0
        %875 = vmatprep.subr.mxu0 0.0
        %876 = vmatpush1.msra.mxu0 0.0
        %877 = vmatprep.subr.mxu0 0.0
        %878 = vmatpush1.msra.mxu0 0.0
        %879 = vmatprep.subr.mxu0 0.0
        %880 = vmatpush1.msra.mxu0 0.0
        %881 = vmatprep.subr.mxu0 0.0
        %882 = vmatpush1.msra.mxu0 0.0
        %883 = vmatprep.subr.mxu0 0.0
        %884 = vmatpush1.msra.mxu0 0.0
        %885 = vmatprep.mubr.f32.mxu0 0.0
        %886 = vmatmul.mubr.f32.gmra.mrb[0].mxu0 %v819
        %v887 = vpop.f32.mrb[0].mxu0
        %v888 = vadd.f32 0.0, %v887
        %v889 = vpop.f32.mrb[0].mxu0
        %890 = vdwg.mxu0
        %891 = vst.msk [vmem:[%s212 + $0x3] sm:$0x1] %vm404, %v888
        %s892 = sld [smem:[#allocation7 + $0x30]]
        %v893 = vstv %s892
        %v894 = vmul.f32 %v893, %v222
        %s895 = sld [smem:[#allocation7 + $0x31]]
        %v896 = vstv %s895
        %v897 = vmul.f32 %v896, %v222
        %899 = vrot.lane.b32.xlu0 %v897, 127
        %v900 = vpop.permute.xlu0 %899
        %v902 = vadd.f32 %v894, %v900
        %s903 = sld [smem:[#allocation7 + $0x32]]
        %v904 = vstv %s903
        %v905 = vmul.f32 %v904, %v222
        %907 = vrot.lane.b32.xlu0 %v905, 126
        %v908 = vpop.permute.xlu0 %907
        %v910 = vadd.f32 %v902, %v908
        %s911 = sld [smem:[#allocation7 + $0x33]]
        %v912 = vstv %s911
        %v913 = vmul.f32 %v912, %v223
        %v914 = vadd.f32 %v910, %v913
        %s915 = sld [smem:[#allocation7 + $0x34]]
        %v916 = vstv %s915
        %v917 = vmul.f32 %v916, %v223
        %919 = vrot.lane.b32.xlu0 %v917, 127
        %v920 = vpop.permute.xlu0 %919
        %v922 = vadd.f32 %v914, %v920
        %s923 = sld [smem:[#allocation7 + $0x35]]
        %v924 = vstv %s923
        %v925 = vmul.f32 %v924, %v223
        %927 = vrot.lane.b32.xlu0 %v925, 126
        %v928 = vpop.permute.xlu0 %927
        %v930 = vadd.f32 %v922, %v928
        %s931 = sld [smem:[#allocation7 + $0x36]]
        %v932 = vstv %s931
        %v933 = vmul.f32 %v932, %v224
        %v934 = vadd.f32 %v930, %v933
        %s935 = sld [smem:[#allocation7 + $0x37]]
        %v936 = vstv %s935
        %v937 = vmul.f32 %v936, %v224
        %939 = vrot.lane.b32.xlu0 %v937, 127
        %v940 = vpop.permute.xlu0 %939
        %v942 = vadd.f32 %v934, %v940
        %s943 = sld [smem:[#allocation7 + $0x38]]
        %v944 = vstv %s943
        %v945 = vmul.f32 %v944, %v224
        %947 = vrot.lane.b32.xlu0 %v945, 126
        %v948 = vpop.permute.xlu0 %947
        %v950 = vadd.f32 %v942, %v948
        %s951 = sld [smem:[#allocation7 + $0x39]]
        %v952 = vstv %s951
        %v953 = vmul.f32 %v952, %v225
        %v954 = vadd.f32 %v950, %v953
        %s955 = sld [smem:[#allocation7 + $0x3a]]
        %v956 = vstv %s955
        %v957 = vmul.f32 %v956, %v225
        %959 = vrot.lane.b32.xlu0 %v957, 127
        %v960 = vpop.permute.xlu0 %959
        %v962 = vadd.f32 %v954, %v960
        %s963 = sld [smem:[#allocation7 + $0x3b]]
        %v964 = vstv %s963
        %v965 = vmul.f32 %v964, %v225
        %967 = vrot.lane.b32.xlu0 %v965, 126
        %v968 = vpop.permute.xlu0 %967
        %v970 = vadd.f32 %v962, %v968
        %s971 = sld [smem:[#allocation8 + $0x4]]
        %v972 = vstv %s971
        %v973 = vadd.f32 %v970, %v972
        %v974 = vmax.f32 %v973, 0.0
        %976 = vrot.lane.b32.xlu0 %v974, 127
        %v977 = vpop.permute.xlu0 %976
        %v979 = vmax.f32 %v974, %v977
        %v981 = vsel %vm326, %v979, 0
        %983 = vmatprep.subr.mxu0 0.0
        %984 = vmatpush1.msra.mxu0 %v236
        %985 = vmatprep.subr.mxu0 0.0
        %986 = vmatpush1.msra.mxu0 %v332
        %987 = vmatprep.subr.mxu0 0.0
        %988 = vmatpush1.msra.mxu0 0.0
        %989 = vmatprep.subr.mxu0 0.0
        %990 = vmatpush1.msra.mxu0 0.0
        %991 = vmatprep.subr.mxu0 0.0
        %992 = vmatpush1.msra.mxu0 0.0
        %993 = vmatprep.subr.mxu0 0.0
        %994 = vmatpush1.msra.mxu0 0.0
        %995 = vmatprep.subr.mxu0 0.0
        %996 = vmatpush1.msra.mxu0 0.0
        %997 = vmatprep.subr.mxu0 0.0
        %998 = vmatpush1.msra.mxu0 0.0
        %999 = vmatprep.subr.mxu0 0.0
        %1000 = vmatpush1.msra.mxu0 0.0
        %1001 = vmatprep.subr.mxu0 0.0
        %1002 = vmatpush1.msra.mxu0 0.0
        %1003 = vmatprep.subr.mxu0 0.0
        %1004 = vmatpush1.msra.mxu0 0.0
        %1005 = vmatprep.subr.mxu0 0.0
        %1006 = vmatpush1.msra.mxu0 0.0
        %1007 = vmatprep.subr.mxu0 0.0
        %1008 = vmatpush1.msra.mxu0 0.0
        %1009 = vmatprep.subr.mxu0 0.0
        %1010 = vmatpush1.msra.mxu0 0.0
        %1011 = vmatprep.subr.mxu0 0.0
        %1012 = vmatpush1.msra.mxu0 0.0
        %1013 = vmatprep.subr.mxu0 0.0
        %1014 = vmatpush1.msra.mxu0 0.0
        %1015 = vmatprep.subr.mxu0 0.0
        %1016 = vmatpush1.msra.mxu0 0.0
        %1017 = vmatprep.subr.mxu0 0.0
        %1018 = vmatpush1.msra.mxu0 0.0
        %1019 = vmatprep.subr.mxu0 0.0
        %1020 = vmatpush1.msra.mxu0 0.0
        %1021 = vmatprep.subr.mxu0 0.0
        %1022 = vmatpush1.msra.mxu0 0.0
        %1023 = vmatprep.subr.mxu0 0.0
        %1024 = vmatpush1.msra.mxu0 0.0
        %1025 = vmatprep.subr.mxu0 0.0
        %1026 = vmatpush1.msra.mxu0 0.0
        %1027 = vmatprep.subr.mxu0 0.0
        %1028 = vmatpush1.msra.mxu0 0.0
        %1029 = vmatprep.subr.mxu0 0.0
        %1030 = vmatpush1.msra.mxu0 0.0
        %1031 = vmatprep.subr.mxu0 0.0
        %1032 = vmatpush1.msra.mxu0 0.0
        %1033 = vmatprep.subr.mxu0 0.0
        %1034 = vmatpush1.msra.mxu0 0.0
        %1035 = vmatprep.subr.mxu0 0.0
        %1036 = vmatpush1.msra.mxu0 0.0
        %1037 = vmatprep.subr.mxu0 0.0
        %1038 = vmatpush1.msra.mxu0 0.0
        %1039 = vmatprep.subr.mxu0 0.0
        %1040 = vmatpush1.msra.mxu0 0.0
        %1041 = vmatprep.subr.mxu0 0.0
        %1042 = vmatpush1.msra.mxu0 0.0
        %1043 = vmatprep.subr.mxu0 0.0
        %1044 = vmatpush1.msra.mxu0 0.0
        %1045 = vmatprep.subr.mxu0 0.0
        %1046 = vmatpush1.msra.mxu0 0.0
        %1047 = vmatprep.mubr.f32.mxu0 0.0
        %1048 = vmatmul.mubr.f32.gmra.mrb[0].mxu0 %v981
        %v1049 = vpop.f32.mrb[0].mxu0
        %v1050 = vadd.f32 0.0, %v1049
        %v1051 = vpop.f32.mrb[0].mxu0
        %1052 = vdwg.mxu0
        %1053 = vst.msk [vmem:[%s212 + $0x4] sm:$0x1] %vm404, %v1050
        %s1054 = sld [smem:[#allocation7 + $0x3c]]
        %v1055 = vstv %s1054
        %v1056 = vmul.f32 %v1055, %v222
        %s1057 = sld [smem:[#allocation7 + $0x3d]]
        %v1058 = vstv %s1057
        %v1059 = vmul.f32 %v1058, %v222
        %1061 = vrot.lane.b32.xlu0 %v1059, 127
        %v1062 = vpop.permute.xlu0 %1061
        %v1064 = vadd.f32 %v1056, %v1062
        %s1065 = sld [smem:[#allocation7 + $0x3e]]
        %v1066 = vstv %s1065
        %v1067 = vmul.f32 %v1066, %v222
        %1069 = vrot.lane.b32.xlu0 %v1067, 126
        %v1070 = vpop.permute.xlu0 %1069
        %v1072 = vadd.f32 %v1064, %v1070
        %s1073 = sld [smem:[#allocation7 + $0x3f]]
        %v1074 = vstv %s1073
        %v1075 = vmul.f32 %v1074, %v223
        %v1076 = vadd.f32 %v1072, %v1075
        %s1077 = sld [smem:[#allocation7 + $0x40]]
        %v1078 = vstv %s1077
        %v1079 = vmul.f32 %v1078, %v223
        %1081 = vrot.lane.b32.xlu0 %v1079, 127
        %v1082 = vpop.permute.xlu0 %1081
        %v1084 = vadd.f32 %v1076, %v1082
        %s1085 = sld [smem:[#allocation7 + $0x41]]
        %v1086 = vstv %s1085
        %v1087 = vmul.f32 %v1086, %v223
        %1089 = vrot.lane.b32.xlu0 %v1087, 126
        %v1090 = vpop.permute.xlu0 %1089
        %v1092 = vadd.f32 %v1084, %v1090
        %s1093 = sld [smem:[#allocation7 + $0x42]]
        %v1094 = vstv %s1093
        %v1095 = vmul.f32 %v1094, %v224
        %v1096 = vadd.f32 %v1092, %v1095
        %s1097 = sld [smem:[#allocation7 + $0x43]]
        %v1098 = vstv %s1097
        %v1099 = vmul.f32 %v1098, %v224
        %1101 = vrot.lane.b32.xlu0 %v1099, 127
        %v1102 = vpop.permute.xlu0 %1101
        %v1104 = vadd.f32 %v1096, %v1102
        %s1105 = sld [smem:[#allocation7 + $0x44]]
        %v1106 = vstv %s1105
        %v1107 = vmul.f32 %v1106, %v224
        %1109 = vrot.lane.b32.xlu0 %v1107, 126
        %v1110 = vpop.permute.xlu0 %1109
        %v1112 = vadd.f32 %v1104, %v1110
        %s1113 = sld [smem:[#allocation7 + $0x45]]
        %v1114 = vstv %s1113
        %v1115 = vmul.f32 %v1114, %v225
        %v1116 = vadd.f32 %v1112, %v1115
        %s1117 = sld [smem:[#allocation7 + $0x46]]
        %v1118 = vstv %s1117
        %v1119 = vmul.f32 %v1118, %v225
        %1121 = vrot.lane.b32.xlu0 %v1119, 127
        %v1122 = vpop.permute.xlu0 %1121
        %v1124 = vadd.f32 %v1116, %v1122
        %s1125 = sld [smem:[#allocation7 + $0x47]]
        %v1126 = vstv %s1125
        %v1127 = vmul.f32 %v1126, %v225
        %1129 = vrot.lane.b32.xlu0 %v1127, 126
        %v1130 = vpop.permute.xlu0 %1129
        %v1132 = vadd.f32 %v1124, %v1130
        %s1133 = sld [smem:[#allocation8 + $0x5]]
        %v1134 = vstv %s1133
        %v1135 = vadd.f32 %v1132, %v1134
        %v1136 = vmax.f32 %v1135, 0.0
        %1138 = vrot.lane.b32.xlu0 %v1136, 127
        %v1139 = vpop.permute.xlu0 %1138
        %v1141 = vmax.f32 %v1136, %v1139
        %v1143 = vsel %vm326, %v1141, 0
        %1145 = vmatprep.subr.mxu0 0.0
        %1146 = vmatpush1.msra.mxu0 %v236
        %1147 = vmatprep.subr.mxu0 0.0
        %1148 = vmatpush1.msra.mxu0 %v332
        %1149 = vmatprep.subr.mxu0 0.0
        %1150 = vmatpush1.msra.mxu0 0.0
        %1151 = vmatprep.subr.mxu0 0.0
        %1152 = vmatpush1.msra.mxu0 0.0
        %1153 = vmatprep.subr.mxu0 0.0
        %1154 = vmatpush1.msra.mxu0 0.0
        %1155 = vmatprep.subr.mxu0 0.0
        %1156 = vmatpush1.msra.mxu0 0.0
        %1157 = vmatprep.subr.mxu0 0.0
        %1158 = vmatpush1.msra.mxu0 0.0
        %1159 = vmatprep.subr.mxu0 0.0
        %1160 = vmatpush1.msra.mxu0 0.0
        %1161 = vmatprep.subr.mxu0 0.0
        %1162 = vmatpush1.msra.mxu0 0.0
        %1163 = vmatprep.subr.mxu0 0.0
        %1164 = vmatpush1.msra.mxu0 0.0
        %1165 = vmatprep.subr.mxu0 0.0
        %1166 = vmatpush1.msra.mxu0 0.0
        %1167 = vmatprep.subr.mxu0 0.0
        %1168 = vmatpush1.msra.mxu0 0.0
        %1169 = vmatprep.subr.mxu0 0.0
        %1170 = vmatpush1.msra.mxu0 0.0
        %1171 = vmatprep.subr.mxu0 0.0
        %1172 = vmatpush1.msra.mxu0 0.0
        %1173 = vmatprep.subr.mxu0 0.0
        %1174 = vmatpush1.msra.mxu0 0.0
        %1175 = vmatprep.subr.mxu0 0.0
        %1176 = vmatpush1.msra.mxu0 0.0
        %1177 = vmatprep.subr.mxu0 0.0
        %1178 = vmatpush1.msra.mxu0 0.0
        %1179 = vmatprep.subr.mxu0 0.0
        %1180 = vmatpush1.msra.mxu0 0.0
        %1181 = vmatprep.subr.mxu0 0.0
        %1182 = vmatpush1.msra.mxu0 0.0
        %1183 = vmatprep.subr.mxu0 0.0
        %1184 = vmatpush1.msra.mxu0 0.0
        %1185 = vmatprep.subr.mxu0 0.0
        %1186 = vmatpush1.msra.mxu0 0.0
        %1187 = vmatprep.subr.mxu0 0.0
        %1188 = vmatpush1.msra.mxu0 0.0
        %1189 = vmatprep.subr.mxu0 0.0
        %1190 = vmatpush1.msra.mxu0 0.0
        %1191 = vmatprep.subr.mxu0 0.0
        %1192 = vmatpush1.msra.mxu0 0.0
        %1193 = vmatprep.subr.mxu0 0.0
        %1194 = vmatpush1.msra.mxu0 0.0
        %1195 = vmatprep.subr.mxu0 0.0
        %1196 = vmatpush1.msra.mxu0 0.0
        %1197 = vmatprep.subr.mxu0 0.0
        %1198 = vmatpush1.msra.mxu0 0.0
        %1199 = vmatprep.subr.mxu0 0.0
        %1200 = vmatpush1.msra.mxu0 0.0
        %1201 = vmatprep.subr.mxu0 0.0
        %1202 = vmatpush1.msra.mxu0 0.0
        %1203 = vmatprep.subr.mxu0 0.0
        %1204 = vmatpush1.msra.mxu0 0.0
        %1205 = vmatprep.subr.mxu0 0.0
        %1206 = vmatpush1.msra.mxu0 0.0
        %1207 = vmatprep.subr.mxu0 0.0
        %1208 = vmatpush1.msra.mxu0 0.0
        %1209 = vmatprep.mubr.f32.mxu0 0.0
        %1210 = vmatmul.mubr.f32.gmra.mrb[0].mxu0 %v1143
        %v1211 = vpop.f32.mrb[0].mxu0
        %v1212 = vadd.f32 0.0, %v1211
        %v1213 = vpop.f32.mrb[0].mxu0
        %1214 = vdwg.mxu0
        %1215 = vst.msk [vmem:[%s212 + $0x5] sm:$0x1] %vm404, %v1212
        %s1216 = sld [smem:[#allocation7 + $0x48]]
        %v1217 = vstv %s1216
        %v1218 = vmul.f32 %v1217, %v222
        %s1219 = sld [smem:[#allocation7 + $0x49]]
        %v1220 = vstv %s1219
        %v1221 = vmul.f32 %v1220, %v222
        %1223 = vrot.lane.b32.xlu0 %v1221, 127
        %v1224 = vpop.permute.xlu0 %1223
        %v1226 = vadd.f32 %v1218, %v1224
        %s1227 = sld [smem:[#allocation7 + $0x4a]]
        %v1228 = vstv %s1227
        %v1229 = vmul.f32 %v1228, %v222
        %1231 = vrot.lane.b32.xlu0 %v1229, 126
        %v1232 = vpop.permute.xlu0 %1231
        %v1234 = vadd.f32 %v1226, %v1232
        %s1235 = sld [smem:[#allocation7 + $0x4b]]
        %v1236 = vstv %s1235
        %v1237 = vmul.f32 %v1236, %v223
        %v1238 = vadd.f32 %v1234, %v1237
        %s1239 = sld [smem:[#allocation7 + $0x4c]]
        %v1240 = vstv %s1239
        %v1241 = vmul.f32 %v1240, %v223
        %1243 = vrot.lane.b32.xlu0 %v1241, 127
        %v1244 = vpop.permute.xlu0 %1243
        %v1246 = vadd.f32 %v1238, %v1244
        %s1247 = sld [smem:[#allocation7 + $0x4d]]
        %v1248 = vstv %s1247
        %v1249 = vmul.f32 %v1248, %v223
        %1251 = vrot.lane.b32.xlu0 %v1249, 126
        %v1252 = vpop.permute.xlu0 %1251
        %v1254 = vadd.f32 %v1246, %v1252
        %s1255 = sld [smem:[#allocation7 + $0x4e]]
        %v1256 = vstv %s1255
        %v1257 = vmul.f32 %v1256, %v224
        %v1258 = vadd.f32 %v1254, %v1257
        %s1259 = sld [smem:[#allocation7 + $0x4f]]
        %v1260 = vstv %s1259
        %v1261 = vmul.f32 %v1260, %v224
        %1263 = vrot.lane.b32.xlu0 %v1261, 127
        %v1264 = vpop.permute.xlu0 %1263
        %v1266 = vadd.f32 %v1258, %v1264
        %s1267 = sld [smem:[#allocation7 + $0x50]]
        %v1268 = vstv %s1267
        %v1269 = vmul.f32 %v1268, %v224
        %1271 = vrot.lane.b32.xlu0 %v1269, 126
        %v1272 = vpop.permute.xlu0 %1271
        %v1274 = vadd.f32 %v1266, %v1272
        %s1275 = sld [smem:[#allocation7 + $0x51]]
        %v1276 = vstv %s1275
        %v1277 = vmul.f32 %v1276, %v225
        %v1278 = vadd.f32 %v1274, %v1277
        %s1279 = sld [smem:[#allocation7 + $0x52]]
        %v1280 = vstv %s1279
        %v1281 = vmul.f32 %v1280, %v225
        %1283 = vrot.lane.b32.xlu0 %v1281, 127
        %v1284 = vpop.permute.xlu0 %1283
        %v1286 = vadd.f32 %v1278, %v1284
        %s1287 = sld [smem:[#allocation7 + $0x53]]
        %v1288 = vstv %s1287
        %v1289 = vmul.f32 %v1288, %v225
        %1291 = vrot.lane.b32.xlu0 %v1289, 126
        %v1292 = vpop.permute.xlu0 %1291
        %v1294 = vadd.f32 %v1286, %v1292
        %s1295 = sld [smem:[#allocation8 + $0x6]]
        %v1296 = vstv %s1295
        %v1297 = vadd.f32 %v1294, %v1296
        %v1298 = vmax.f32 %v1297, 0.0
        %1300 = vrot.lane.b32.xlu0 %v1298, 127
        %v1301 = vpop.permute.xlu0 %1300
        %v1303 = vmax.f32 %v1298, %v1301
        %v1305 = vsel %vm326, %v1303, 0
        %1307 = vmatprep.subr.mxu0 0.0
        %1308 = vmatpush1.msra.mxu0 %v236
        %1309 = vmatprep.subr.mxu0 0.0
        %1310 = vmatpush1.msra.mxu0 %v332
        %1311 = vmatprep.subr.mxu0 0.0
        %1312 = vmatpush1.msra.mxu0 0.0
        %1313 = vmatprep.subr.mxu0 0.0
        %1314 = vmatpush1.msra.mxu0 0.0
        %1315 = vmatprep.subr.mxu0 0.0
        %1316 = vmatpush1.msra.mxu0 0.0
        %1317 = vmatprep.subr.mxu0 0.0
        %1318 = vmatpush1.msra.mxu0 0.0
        %1319 = vmatprep.subr.mxu0 0.0
        %1320 = vmatpush1.msra.mxu0 0.0
        %1321 = vmatprep.subr.mxu0 0.0
        %1322 = vmatpush1.msra.mxu0 0.0
        %1323 = vmatprep.subr.mxu0 0.0
        %1324 = vmatpush1.msra.mxu0 0.0
        %1325 = vmatprep.subr.mxu0 0.0
        %1326 = vmatpush1.msra.mxu0 0.0
        %1327 = vmatprep.subr.mxu0 0.0
        %1328 = vmatpush1.msra.mxu0 0.0
        %1329 = vmatprep.subr.mxu0 0.0
        %1330 = vmatpush1.msra.mxu0 0.0
        %1331 = vmatprep.subr.mxu0 0.0
        %1332 = vmatpush1.msra.mxu0 0.0
        %1333 = vmatprep.subr.mxu0 0.0
        %1334 = vmatpush1.msra.mxu0 0.0
        %1335 = vmatprep.subr.mxu0 0.0
        %1336 = vmatpush1.msra.mxu0 0.0
        %1337 = vmatprep.subr.mxu0 0.0
        %1338 = vmatpush1.msra.mxu0 0.0
        %1339 = vmatprep.subr.mxu0 0.0
        %1340 = vmatpush1.msra.mxu0 0.0
        %1341 = vmatprep.subr.mxu0 0.0
        %1342 = vmatpush1.msra.mxu0 0.0
        %1343 = vmatprep.subr.mxu0 0.0
        %1344 = vmatpush1.msra.mxu0 0.0
        %1345 = vmatprep.subr.mxu0 0.0
        %1346 = vmatpush1.msra.mxu0 0.0
        %1347 = vmatprep.subr.mxu0 0.0
        %1348 = vmatpush1.msra.mxu0 0.0
        %1349 = vmatprep.subr.mxu0 0.0
        %1350 = vmatpush1.msra.mxu0 0.0
        %1351 = vmatprep.subr.mxu0 0.0
        %1352 = vmatpush1.msra.mxu0 0.0
        %1353 = vmatprep.subr.mxu0 0.0
        %1354 = vmatpush1.msra.mxu0 0.0
        %1355 = vmatprep.subr.mxu0 0.0
        %1356 = vmatpush1.msra.mxu0 0.0
        %1357 = vmatprep.subr.mxu0 0.0
        %1358 = vmatpush1.msra.mxu0 0.0
        %1359 = vmatprep.subr.mxu0 0.0
        %1360 = vmatpush1.msra.mxu0 0.0
        %1361 = vmatprep.subr.mxu0 0.0
        %1362 = vmatpush1.msra.mxu0 0.0
        %1363 = vmatprep.subr.mxu0 0.0
        %1364 = vmatpush1.msra.mxu0 0.0
        %1365 = vmatprep.subr.mxu0 0.0
        %1366 = vmatpush1.msra.mxu0 0.0
        %1367 = vmatprep.subr.mxu0 0.0
        %1368 = vmatpush1.msra.mxu0 0.0
        %1369 = vmatprep.subr.mxu0 0.0
        %1370 = vmatpush1.msra.mxu0 0.0
        %1371 = vmatprep.mubr.f32.mxu0 0.0
        %1372 = vmatmul.mubr.f32.gmra.mrb[0].mxu0 %v1305
        %v1373 = vpop.f32.mrb[0].mxu0
        %v1374 = vadd.f32 0.0, %v1373
        %v1375 = vpop.f32.mrb[0].mxu0
        %1376 = vdwg.mxu0
        %1377 = vst.msk [vmem:[%s212 + $0x6] sm:$0x1] %vm404, %v1374
        %s1378 = sld [smem:[#allocation7 + $0x54]]
        %v1379 = vstv %s1378
        %v1380 = vmul.f32 %v1379, %v222
        %s1381 = sld [smem:[#allocation7 + $0x55]]
        %v1382 = vstv %s1381
        %v1383 = vmul.f32 %v1382, %v222
        %1385 = vrot.lane.b32.xlu0 %v1383, 127
        %v1386 = vpop.permute.xlu0 %1385
        %v1388 = vadd.f32 %v1380, %v1386
        %s1389 = sld [smem:[#allocation7 + $0x56]]
        %v1390 = vstv %s1389
        %v1391 = vmul.f32 %v1390, %v222
        %1393 = vrot.lane.b32.xlu0 %v1391, 126
        %v1394 = vpop.permute.xlu0 %1393
        %v1396 = vadd.f32 %v1388, %v1394
        %s1397 = sld [smem:[#allocation7 + $0x57]]
        %v1398 = vstv %s1397
        %v1399 = vmul.f32 %v1398, %v223
        %v1400 = vadd.f32 %v1396, %v1399
        %s1401 = sld [smem:[#allocation7 + $0x58]]
        %v1402 = vstv %s1401
        %v1403 = vmul.f32 %v1402, %v223
        %1405 = vrot.lane.b32.xlu0 %v1403, 127
        %v1406 = vpop.permute.xlu0 %1405
        %v1408 = vadd.f32 %v1400, %v1406
        %s1409 = sld [smem:[#allocation7 + $0x59]]
        %v1410 = vstv %s1409
        %v1411 = vmul.f32 %v1410, %v223
        %1413 = vrot.lane.b32.xlu0 %v1411, 126
        %v1414 = vpop.permute.xlu0 %1413
        %v1416 = vadd.f32 %v1408, %v1414
        %s1417 = sld [smem:[#allocation7 + $0x5a]]
        %v1418 = vstv %s1417
        %v1419 = vmul.f32 %v1418, %v224
        %v1420 = vadd.f32 %v1416, %v1419
        %s1421 = sld [smem:[#allocation7 + $0x5b]]
        %v1422 = vstv %s1421
        %v1423 = vmul.f32 %v1422, %v224
        %1425 = vrot.lane.b32.xlu0 %v1423, 127
        %v1426 = vpop.permute.xlu0 %1425
        %v1428 = vadd.f32 %v1420, %v1426
        %s1429 = sld [smem:[#allocation7 + $0x5c]]
        %v1430 = vstv %s1429
        %v1431 = vmul.f32 %v1430, %v224
        %1433 = vrot.lane.b32.xlu0 %v1431, 126
        %v1434 = vpop.permute.xlu0 %1433
        %v1436 = vadd.f32 %v1428, %v1434
        %s1437 = sld [smem:[#allocation7 + $0x5d]]
        %v1438 = vstv %s1437
        %v1439 = vmul.f32 %v1438, %v225
        %v1440 = vadd.f32 %v1436, %v1439
        %s1441 = sld [smem:[#allocation7 + $0x5e]]
        %v1442 = vstv %s1441
        %v1443 = vmul.f32 %v1442, %v225
        %1445 = vrot.lane.b32.xlu0 %v1443, 127
        %v1446 = vpop.permute.xlu0 %1445
        %v1448 = vadd.f32 %v1440, %v1446
        %s1449 = sld [smem:[#allocation7 + $0x5f]]
        %v1450 = vstv %s1449
        %v1451 = vmul.f32 %v1450, %v225
        %1453 = vrot.lane.b32.xlu0 %v1451, 126
        %v1454 = vpop.permute.xlu0 %1453
        %v1456 = vadd.f32 %v1448, %v1454
        %s1457 = sld [smem:[#allocation8 + $0x7]]
        %v1458 = vstv %s1457
        %v1459 = vadd.f32 %v1456, %v1458
        %v1460 = vmax.f32 %v1459, 0.0
        %1462 = vrot.lane.b32.xlu0 %v1460, 127
        %v1463 = vpop.permute.xlu0 %1462
        %v1465 = vmax.f32 %v1460, %v1463
        %v1467 = vsel %vm326, %v1465, 0
        %1469 = vmatprep.subr.mxu0 0.0
        %1470 = vmatpush1.msra.mxu0 %v236
        %1471 = vmatprep.subr.mxu0 0.0
        %1472 = vmatpush1.msra.mxu0 %v332
        %1473 = vmatprep.subr.mxu0 0.0
        %1474 = vmatpush1.msra.mxu0 0.0
        %1475 = vmatprep.subr.mxu0 0.0
        %1476 = vmatpush1.msra.mxu0 0.0
        %1477 = vmatprep.subr.mxu0 0.0
        %1478 = vmatpush1.msra.mxu0 0.0
        %1479 = vmatprep.subr.mxu0 0.0
        %1480 = vmatpush1.msra.mxu0 0.0
        %1481 = vmatprep.subr.mxu0 0.0
        %1482 = vmatpush1.msra.mxu0 0.0
        %1483 = vmatprep.subr.mxu0 0.0
        %1484 = vmatpush1.msra.mxu0 0.0
        %1485 = vmatprep.subr.mxu0 0.0
        %1486 = vmatpush1.msra.mxu0 0.0
        %1487 = vmatprep.subr.mxu0 0.0
        %1488 = vmatpush1.msra.mxu0 0.0
        %1489 = vmatprep.subr.mxu0 0.0
        %1490 = vmatpush1.msra.mxu0 0.0
        %1491 = vmatprep.subr.mxu0 0.0
        %1492 = vmatpush1.msra.mxu0 0.0
        %1493 = vmatprep.subr.mxu0 0.0
        %1494 = vmatpush1.msra.mxu0 0.0
        %1495 = vmatprep.subr.mxu0 0.0
        %1496 = vmatpush1.msra.mxu0 0.0
        %1497 = vmatprep.subr.mxu0 0.0
        %1498 = vmatpush1.msra.mxu0 0.0
        %1499 = vmatprep.subr.mxu0 0.0
        %1500 = vmatpush1.msra.mxu0 0.0
        %1501 = vmatprep.subr.mxu0 0.0
        %1502 = vmatpush1.msra.mxu0 0.0
        %1503 = vmatprep.subr.mxu0 0.0
        %1504 = vmatpush1.msra.mxu0 0.0
        %1505 = vmatprep.subr.mxu0 0.0
        %1506 = vmatpush1.msra.mxu0 0.0
        %1507 = vmatprep.subr.mxu0 0.0
        %1508 = vmatpush1.msra.mxu0 0.0
        %1509 = vmatprep.subr.mxu0 0.0
        %1510 = vmatpush1.msra.mxu0 0.0
        %1511 = vmatprep.subr.mxu0 0.0
        %1512 = vmatpush1.msra.mxu0 0.0
        %1513 = vmatprep.subr.mxu0 0.0
        %1514 = vmatpush1.msra.mxu0 0.0
        %1515 = vmatprep.subr.mxu0 0.0
        %1516 = vmatpush1.msra.mxu0 0.0
        %1517 = vmatprep.subr.mxu0 0.0
        %1518 = vmatpush1.msra.mxu0 0.0
        %1519 = vmatprep.subr.mxu0 0.0
        %1520 = vmatpush1.msra.mxu0 0.0
        %1521 = vmatprep.subr.mxu0 0.0
        %1522 = vmatpush1.msra.mxu0 0.0
        %1523 = vmatprep.subr.mxu0 0.0
        %1524 = vmatpush1.msra.mxu0 0.0
        %1525 = vmatprep.subr.mxu0 0.0
        %1526 = vmatpush1.msra.mxu0 0.0
        %1527 = vmatprep.subr.mxu0 0.0
        %1528 = vmatpush1.msra.mxu0 0.0
        %1529 = vmatprep.subr.mxu0 0.0
        %1530 = vmatpush1.msra.mxu0 0.0
        %1531 = vmatprep.subr.mxu0 0.0
        %1532 = vmatpush1.msra.mxu0 0.0
        %1533 = vmatprep.mubr.f32.mxu0 0.0
        %1534 = vmatmul.mubr.f32.gmra.mrb[0].mxu0 %v1467
        %v1535 = vpop.f32.mrb[0].mxu0
        %v1536 = vadd.f32 0.0, %v1535
        %v1537 = vpop.f32.mrb[0].mxu0
        %1538 = vdwg.mxu0
        %1539 = vst.msk [vmem:[%s212 + $0x7] sm:$0x1] %vm404, %v1536
        %s1540 = sand.u32 %s98, 1
        %s1541 = scalar_lea.sflag [#allocation5], %s1540
        %s1542 = sand.u32 %s98, 1
        %s1543 = smul.addr %s1542, 8
        %s1544 = scalar_lea.vmem [#allocation10], %s1543
        // Predicated region
        $region45: #{tpu_custom_call.1} parent=31 // pred_check
          %p1545 = pneg %p108
        $region46: #{tpu_custom_call.1} parent=31 // pred_check_branch
          %1547 = sbr.rel (%p1545) target = $region48
        $region47: #{tpu_custom_call.1} parent=31 // pred_region
          %s1549 = ssub.s32 128, 128
          %1550 = vsyncadd %s1541, %s1549
          %s1551 = smul.addr %s22, 128
          %s1552 = scalar_lea.hbm %s3, %s1551
          %s1554 = sshll.u32 %s1544, 4
          %s1555 = int_to_ptr.vmem [resolvable:$true] %s1554
          %1557 = dma.vmem_to_hbm [thread:$0]  %s1555, 128, %s1552, %s1541
        $region48: #{tpu_custom_call.1} parent=31 // pred_fallthru
          _
      $region32: #{tpu_custom_call.1} parent=5 // pred_fallthru
        _
      %p1558 = scmp.le.s32.totalorder 2, %s17
      // Predicated region
      $region49: #{tpu_custom_call.1} parent=5 // pred_check
        %p1559 = pneg %p1558
      $region50: #{tpu_custom_call.1} parent=5 // pred_check_branch
        %1561 = sbr.rel (%p1559) target = $region52
      $region51: #{tpu_custom_call.1} parent=5 // pred_region
        %s1562 = ssub.s32 %s17, 2
        // Predicated region
        $region53: #{tpu_custom_call.1} parent=51 // pred_check
          %p1563 = pneg %p114
        $region54: #{tpu_custom_call.1} parent=51 // pred_check_branch
          %1565 = sbr.rel (%p1563) target = $region56
        $region55: #{tpu_custom_call.1} parent=51 // pred_region
          %s1566 = sand.u32 %s99, 1
          %s1567 = scalar_lea.sflag [#allocation5], %s1566
          %s1568 = sand.u32 %s99, 1
          %s1569 = smul.addr %s1568, 8
          %s1570 = scalar_lea.vmem [#allocation10], %s1569
          %1571 = dma.done %s1567, 128
        $region56: #{tpu_custom_call.1} parent=51 // pred_fallthru
          _
      $region52: #{tpu_custom_call.1} parent=5 // pred_fallthru
        _
    $region6: #{tpu_custom_call.1} parent=1 // loop_footer
      %s21 = sadd.s32 1, %s17
    $region7: #{tpu_custom_call.1} parent=1 // loop_footer_branch
      %16 = sbr.rel target = $region3
    $region8: #{tpu_custom_call.1} parent=1 // loop_exit
      _
    %1572 = vsyncpa [#allocation4], 1
    %s1573 = scalar_lea.sflag [#allocation4], 1
    %1574 = vsyncpa %s1573, 1
    %1575 = vsyncpa [#allocation5], 1
    %s1576 = scalar_lea.sflag [#allocation5], 1
    %1577 = vsyncpa %s1576, 1
    %1578 = vsyncpa [#allocation6], 1
    %s1579 = scalar_lea.sflag [#allocation6], 1
    %1580 = vsyncpa %s1579, 1
    %1581 = vsyncpa [#allocation9], 1

</llo_original>
